<compile_context>
chip_gen: v5e
topology: v5e:2x2
jax: 0.10.0
libtpu: 0.0.40
codegen_flags: <defaults>
</compile_context>

<pallas_src>
from functools import partial

import numpy as np
import jax
import jax.numpy as jnp
from jax.experimental import pallas as pl
from jax.experimental.pallas import tpu as pltpu


# ----------------------------------------------------------------------------
# Pallas kernel: norm1 + Token_Pair_Attention (+ folded proj) + residual
#                + gpu_pair re-pairing + task-token split
# ----------------------------------------------------------------------------
def _token_pair_block_kernel(x_ref, gamma_ref, beta_ref, w_ref, bproj_ref,
                             keep_ref, cls_task_ref, box_task_ref,
                             cls_attn_ref, box_attn_ref, *, num_heads):
    """Shapes (all f32):
      x_ref         (B, N, C)        cat(cls, box, general) tokens
      gamma/beta    (1, C)           norm1 affine
      w_ref         (G, C, 2*Dh+C)   per-(batch,head) [Wq*scale | Wk | Wv@Wproj]
      bproj_ref     (1, C)
      keep_ref      (N, N)           1 everywhere except 0 at (0,1) and (1,0)
      cls_task_ref  (B, NG/2+1, C)
      box_task_ref  (B, NG/2+1, C)
      cls_attn_ref  (B, 1, NG)       head-mean attention row 0 over general tokens
      box_attn_ref  (B, 1, NG)       head-mean attention row 1 over general tokens
    """
    x = x_ref[...]                              # (B, N, C)
    B, N, C = x.shape
    H = num_heads
    Dh = C // H
    G = B * H
    NG = N - 2
    HALF = NG // 2

    # ---- LayerNorm over channels (eps = 1e-5, biased variance) ----
    mean = jnp.mean(x, axis=-1, keepdims=True)
    xc = x - mean
    var = jnp.mean(xc * xc, axis=-1, keepdims=True)
    xn = xc * jax.lax.rsqrt(var + 1e-5) * gamma_ref[...] + beta_ref[...]

    # ---- fused per-head projection: ONE batched matmul, 48-lane output ----
    xn_g = jnp.broadcast_to(xn[:, None], (B, H, N, C)).reshape(G, N, C)
    qkvp = jnp.einsum('gnc,gcd->gnd', xn_g, w_ref[...],
                      preferred_element_type=jnp.float32)         # (G, N, 2Dh+C)
    q = qkvp[:, :, 0:Dh]                 # scale already folded into Wq
    k = qkvp[:, :, Dh:2 * Dh]
    vproj = qkvp[:, :, 2 * Dh:]          # Wproj already folded into Wv

    # ---- attention logits for ALL heads in one batched dot_general ----
    logits = jnp.einsum('gnd,gmd->gnm', q, k,
                        preferred_element_type=jnp.float32)        # (G, N, N)
    # zero (row 0, col 1) and (row 1, col 0) pre-softmax (matches attn[...] = 0)
    logits = logits * keep_ref[...][None]

    # ---- softmax (reciprocal on the EUP slot) ----
    m = jnp.max(logits, axis=-1, keepdims=True)
    e = jnp.exp(logits - m)
    attn = e * pl.reciprocal(jnp.sum(e, axis=-1, keepdims=True), approx=True)

    # ---- attn @ (V @ Wproj) for all heads, reduce over heads, residual ----
    out_g = jnp.einsum('gnm,gmc->gnc', attn, vproj,
                       preferred_element_type=jnp.float32)         # (G, N, C)
    out = x + jnp.sum(out_g.reshape(B, H, N, C), axis=1) + bproj_ref[...]

    # ---- head-averaged cls / box attention rows (kept as (B,1,N) lanes) ----
    cls_col = jnp.mean(attn[:, 0:1, :].reshape(B, H, 1, N), axis=1)   # (B,1,N)
    box_col = jnp.mean(attn[:, 1:2, :].reshape(B, H, 1, N), axis=1)   # (B,1,N)
    cls_attn_ref[...] = cls_col[:, :, 2:]
    box_attn_ref[...] = box_col[:, :, 2:]

    # ---- gpu_pair re-pairing, fully vectorized in-kernel --------------------
    # rank each general token by descending (cls+box) attention (stable, index
    # tie-break); box-dominant tokens fill slots from the front, cls-dominant
    # tokens fill slots from the back (NG-1 downward).
    n_idx = jax.lax.broadcasted_iota(jnp.int32, (N, N), 0)   # ranked token i
    m_idx = jax.lax.broadcasted_iota(jnp.int32, (N, N), 1)   # other token j
    eye = (n_idx == m_idx).astype(jnp.float32)               # (N, N)

    sum_col = cls_col + box_col                               # (B,1,N)
    comp_col = (box_col > cls_col).astype(jnp.float32)        # (B,1,N)
    # row-oriented copy of sum (token i value constant along lanes)
    sum_row = jnp.sum(sum_col * eye[None], axis=-1, keepdims=True)    # (B,N,1)

    before = ((m_idx[None] >= 2)
              & ((sum_col > sum_row)
                 | ((sum_col == sum_row) & (m_idx[None] < n_idx[None]))))
    before_f = before.astype(jnp.float32)                     # (B,N,N)
    rank = jnp.sum(before_f, axis=-1, keepdims=True)          # (B,N,1)
    nbox = jnp.sum(before_f * comp_col, axis=-1, keepdims=True)
    ncls = rank - nbox
    comp_row = jnp.sum(comp_col * eye[None], axis=-1, keepdims=True)  # (B,N,1)
    pos_row = jnp.where(comp_row > 0.5, nbox, (NG - 1) - ncls)        # (B,N,1)
    # back to lane orientation: pos_col[b,0,j] = pos_row[b,j,0]
    pos_col = jnp.sum(pos_row * eye[None], axis=1, keepdims=True)     # (B,1,N)

    tok = jax.lax.broadcasted_iota(jnp.int32, (1, 1, N), 2)
    target_cls = jnp.where(
        tok == 0, 0.0,
        jnp.where((tok >= 2) & (pos_col <= HALF - 1), pos_col + 1.0, -1.0))
    target_box = jnp.where(
        tok == 1, 0.0,
        jnp.where((tok >= 2) & (pos_col >= HALF), pos_col - (HALF - 1.0), -1.0))

    prow = jax.lax.broadcasted_iota(
        jnp.int32, (1, HALF + 1, N), 1).astype(jnp.float32)           # (1,P,N)
    p_cls = (prow == target_cls).astype(jnp.float32)                  # (B,P,N)
    p_box = (prow == target_box).astype(jnp.float32)                  # (B,P,N)

    # one-hot selection matmuls produce the task tokens directly
    cls_task_ref[...] = jnp.einsum('bpn,bnc->bpc', p_cls, out,
                                   preferred_element_type=jnp.float32)
    box_task_ref[...] = jnp.einsum('bpn,bnc->bpc', p_box, out,
                                   preferred_element_type=jnp.float32)


# ----------------------------------------------------------------------------
# One-time parameter preparation (all folds / transposes hoisted off the hot path)
# ----------------------------------------------------------------------------
def prepare_params(gamma, beta, wqkv, wproj, bproj, num_heads, batch, seq_len):
    """PyTorch layouts in: wqkv (3C, C), wproj (C, C) — (out_features, in_features).
    The prepared weights are replicated to a (G = batch*num_heads)-leading shape,
    so `prepared` is specific to this batch size."""
    C = gamma.shape[-1]
    H = num_heads
    Dh = C // H
    scale = Dh ** (-0.5)

    wqkv = wqkv.astype(jnp.float32)
    wproj = wproj.astype(jnp.float32)
    # qkv rows: [0:C]=q, [C:2C]=k, [2C:3C]=v; within each block, head-major.
    w3 = wqkv.reshape(3, H, Dh, C)                              # (3,H,Dh,C)
    wq = jnp.transpose(w3[0], (0, 2, 1)) * jnp.float32(scale)   # (H,C,Dh) scale folded
    wk = jnp.transpose(w3[1], (0, 2, 1))                        # (H,C,Dh)
    wv = jnp.transpose(w3[2], (0, 2, 1))                        # (H,C,Dh)
    # wproj.T rows are the head-major attention-output channels.
    wp = jnp.transpose(wproj).reshape(H, Dh, C)                 # (H,Dh,C)
    # fold the output projection into V: Wvp_h = Wv_h @ Wproj_h
    wvp = jnp.einsum('hcd,hdk->hck', wv, wp,
                     precision=jax.lax.Precision.HIGHEST)       # (H,C,C)
    w_all = jnp.concatenate([wq, wk, wvp], axis=-1)             # (H,C,2Dh+C)
    # pre-replicate to G-leading so the kernel does no weight broadcast/reshape
    G = batch * H
    w_all_g = jnp.broadcast_to(
        w_all[None], (batch,) + w_all.shape).reshape(G, C, 2 * Dh + C)

    keep = np.ones((seq_len, seq_len), np.float32)
    keep[0, 1] = 0.0
    keep[1, 0] = 0.0

    return (gamma.reshape(1, C).astype(jnp.float32),
            beta.reshape(1, C).astype(jnp.float32),
            w_all_g,
            bproj.reshape(1, C).astype(jnp.float32),
            jnp.asarray(keep))


# ----------------------------------------------------------------------------
# Wrappers
# ----------------------------------------------------------------------------
@partial(jax.jit, static_argnames=("num_heads",))
def _run_block(cat_token, gamma, beta, w_all_g, bproj, keep_mask, num_heads):
    B, N, C = cat_token.shape
    NG = N - 2
    HALF = NG // 2
    kernel = partial(_token_pair_block_kernel, num_heads=num_heads)
    vmem = pl.BlockSpec(memory_space=pltpu.MemorySpace.VMEM)
    cls_task, box_task, cls_attn, box_attn = pl.pallas_call(
        kernel,
        out_shape=(jax.ShapeDtypeStruct((B, HALF + 1, C), jnp.float32),
                   jax.ShapeDtypeStruct((B, HALF + 1, C), jnp.float32),
                   jax.ShapeDtypeStruct((B, 1, NG), jnp.float32),
                   jax.ShapeDtypeStruct((B, 1, NG), jnp.float32)),
        in_specs=[vmem] * 6,
        out_specs=(vmem, vmem, vmem, vmem),
    )(cat_token.astype(jnp.float32), gamma, beta, w_all_g, bproj, keep_mask)
    return cls_task, box_task, cls_attn.reshape(B, NG), box_attn.reshape(B, NG)


@partial(jax.jit, static_argnames=("num_heads",))
def token_pair_block_forward(general_token, cls_token, box_token, prepared, num_heads):
    # cat order in PyTorch: [cls_token, box_token, general_token]
    cat_token = jnp.concatenate([cls_token, box_token, general_token], axis=1)
    B, N, C = cat_token.shape
    assert N - 2 == 16, "gpu_pair hard-codes 16 general tokens (cls_token_cnt = 15)"
    gamma, beta, w_all_g, bproj, keep_mask = prepared
    cls_task, box_task, _, _ = _run_block(
        cat_token, gamma, beta, w_all_g, bproj, keep_mask, num_heads=num_heads)
    return cls_task, box_task


# ----------------------------------------------------------------------------
# Plain-JAX references (for the sanity check)
# ----------------------------------------------------------------------------
def ref_attention_block(cat_token, gamma, beta, wqkv, wproj, bproj, num_heads):
    B, N, C = cat_token.shape
    H = num_heads
    Dh = C // H
    mean = cat_token.mean(-1, keepdims=True)
    var = ((cat_token - mean) ** 2).mean(-1, keepdims=True)
    xn = (cat_token - mean) / jnp.sqrt(var + 1e-5) * gamma + beta
    qkv = xn @ wqkv.T
    qkv = qkv.reshape(B, N, 3, H, Dh).transpose(2, 0, 3, 1, 4)
    q, k, v = qkv[0], qkv[1], qkv[2]
    attn = jnp.einsum('bhnd,bhmd->bhnm', q, k) * (Dh ** -0.5)
    attn = attn.at[:, :, 0, 1].set(0.0).at[:, :, 1, 0].set(0.0)
    attn = jax.nn.softmax(attn, axis=-1)
    xo = jnp.einsum('bhnm,bhmd->bhnd', attn, v).transpose(0, 2, 1, 3).reshape(B, N, C)
    xo = xo @ wproj.T + bproj
    return cat_token + xo, attn[:, :, 0, 2:].mean(1), attn[:, :, 1, 2:].mean(1)


def ref_pair_and_split(out, cls_attn, box_attn):
    """argsort/cumsum reference of gpu_pair + the final gather/concat."""
    B, N, C = out.shape
    NG = N - 2
    general_o, cls_o, box_o = out[:, 2:], out[:, 0:1], out[:, 1:2]
    sum_attn = cls_attn + box_attn
    comp = box_attn > cls_attn

    def build_idx(sum_b, comp_b):
        order = jnp.argsort(-sum_b)                       # descending, stable
        comp_sorted = comp_b[order]
        box_pos = jnp.cumsum(comp_sorted.astype(jnp.int32)) - 1
        cls_pos = (NG - 1) - (jnp.cumsum((~comp_sorted).astype(jnp.int32)) - 1)
        pos = jnp.where(comp_sorted, box_pos, cls_pos)
        return jnp.zeros((NG,), jnp.int32).at[pos].set(order.astype(jnp.int32))

    idx = jax.vmap(build_idx)(sum_attn, comp)
    gathered = jnp.take_along_axis(
        general_o, jnp.broadcast_to(idx[:, :, None], (B, NG, C)), axis=1)
    half = NG // 2
    cls_task = jnp.concatenate([cls_o, gathered[:, :half]], axis=1)
    box_task = jnp.concatenate([box_o, gathered[:, half:]], axis=1)
    return cls_task, box_task


# ----------------------------------------------------------------------------
if __name__ == "__main__":
    B, NG, C, H = 2, 16, 32, 4     # 16 general tokens + cls + box -> N = 18
    N = NG + 2
    key = jax.random.PRNGKey(0)
    ks = jax.random.split(key, 6)

    general_token = jax.random.normal(ks[0], (B, NG, C), jnp.float32)
    cls_token = jax.random.normal(ks[1], (B, 1, C), jnp.float32)
    box_token = jax.random.normal(ks[2], (B, 1, C), jnp.float32)

    # deterministic parameters (PyTorch layout: (out_features, in_features))
    gamma = jnp.ones((C,), jnp.float32)            # norm1.weight
    beta = jnp.zeros((C,), jnp.float32)            # norm1.bias
    wqkv = jax.random.normal(ks[3], (3 * C, C), jnp.float32) * 0.02   # qkv (no bias)
    wproj = jax.random.normal(ks[4], (C, C), jnp.float32) * 0.02      # proj.weight
    bproj = jax.random.normal(ks[5], (C,), jnp.float32) * 0.02        # proj.bias

    prepared = prepare_params(gamma, beta, wqkv, wproj, bproj, H,
                              batch=B, seq_len=N)

    cls_task, box_task = token_pair_block_forward(
        general_token, cls_token, box_token, prepared, num_heads=H)
    jax.block_until_ready((cls_task, box_task))
    assert cls_task.shape == (B, NG // 2 + 1, C)
    assert box_task.shape == (B, NG // 2 + 1, C)

    # ---- sanity check against plain-JAX references -------------------------
    cat_token = jnp.concatenate([cls_token, box_token, general_token], axis=1)
    cls_task_k, box_task_k, cls_attn_k, box_attn_k = _run_block(
        cat_token, *prepared, num_heads=H)
    with jax.default_matmul_precision("float32"):
        out_r, cls_attn_r, box_attn_r = ref_attention_block(
            cat_token, gamma, beta, wqkv, wproj, bproj, H)

    # attention rows: independent full-precision reference
    assert np.max(np.abs(np.asarray(cls_attn_k) - np.asarray(cls_attn_r))) < 1e-3
    assert np.max(np.abs(np.asarray(box_attn_k) - np.asarray(box_attn_r))) < 1e-3

    # pairing + task tokens: apply the argsort reference to the KERNEL's own
    # attention rows (so the permutation is tie-consistent) and the reference
    # attention-block output.
    cls_task_r, box_task_r = ref_pair_and_split(out_r, cls_attn_k, box_attn_k)
    assert np.max(np.abs(np.asarray(cls_task_k) - np.asarray(cls_task_r))) < 1e-3
    assert np.max(np.abs(np.asarray(box_task_k) - np.asarray(box_task_r))) < 1e-3

    print("KERNEL_OK")
</pallas_src>

<mosaic_0001>
module attributes {stable_mosaic.version = 11 : i64} {
  func.func @_token_pair_block_kernel(%arg0: memref<2x18x32xf32, #tpu.memory_space<vmem>>, %arg1: memref<1x32xf32, #tpu.memory_space<vmem>>, %arg2: memref<1x32xf32, #tpu.memory_space<vmem>>, %arg3: memref<8x32x48xf32, #tpu.memory_space<vmem>>, %arg4: memref<1x32xf32, #tpu.memory_space<vmem>>, %arg5: memref<18x18xf32, #tpu.memory_space<vmem>>, %arg6: memref<2x9x32xf32, #tpu.memory_space<vmem>>, %arg7: memref<2x9x32xf32, #tpu.memory_space<vmem>>, %arg8: memref<2x1x16xf32, #tpu.memory_space<vmem>>, %arg9: memref<2x1x16xf32, #tpu.memory_space<vmem>>) attributes {dimension_semantics = [], scalar_prefetch = 0 : i64, scratch_operands = 0 : i64, tpu.core_type = #tpu.core_type<tc>} {
    %c0 = arith.constant 0 : index
    %c0_0 = arith.constant 0 : index
    %c0_1 = arith.constant 0 : index
    %0 = vector.load %arg0[%c0, %c0_0, %c0_1] : memref<2x18x32xf32, #tpu.memory_space<vmem>>, vector<2x18x32xf32>
    %cst = arith.constant dense<0.000000e+00> : vector<2x18xf32>
    %1 = vector.multi_reduction <add>, %0, %cst [2] : vector<2x18x32xf32> to vector<2x18xf32>
    %2 = vector.shape_cast %1 : vector<2x18xf32> to vector<2x18x1xf32>
    %cst_2 = arith.constant 3.200000e+01 : f32
    %3 = vector.broadcast %cst_2 : f32 to vector<2x18x1xf32>
    %4 = arith.divf %2, %3 : vector<2x18x1xf32>
    %5 = vector.broadcast %4 : vector<2x18x1xf32> to vector<2x18x32xf32>
    %6 = arith.subf %0, %5 : vector<2x18x32xf32>
    %7 = arith.mulf %6, %6 : vector<2x18x32xf32>
    %cst_3 = arith.constant dense<0.000000e+00> : vector<2x18xf32>
    %8 = vector.multi_reduction <add>, %7, %cst_3 [2] : vector<2x18x32xf32> to vector<2x18xf32>
    %9 = vector.shape_cast %8 : vector<2x18xf32> to vector<2x18x1xf32>
    %cst_4 = arith.constant 3.200000e+01 : f32
    %10 = vector.broadcast %cst_4 : f32 to vector<2x18x1xf32>
    %11 = arith.divf %9, %10 : vector<2x18x1xf32>
    %cst_5 = arith.constant 9.99999974E-6 : f32
    %12 = vector.broadcast %cst_5 : f32 to vector<2x18x1xf32>
    %13 = arith.addf %11, %12 : vector<2x18x1xf32>
    %14 = math.rsqrt %13 : vector<2x18x1xf32>
    %15 = vector.broadcast %14 : vector<2x18x1xf32> to vector<2x18x32xf32>
    %16 = arith.mulf %6, %15 : vector<2x18x32xf32>
    %c0_6 = arith.constant 0 : index
    %c0_7 = arith.constant 0 : index
    %17 = vector.load %arg1[%c0_6, %c0_7] : memref<1x32xf32, #tpu.memory_space<vmem>>, vector<1x32xf32>
    %18 = vector.shape_cast %17 : vector<1x32xf32> to vector<1x1x32xf32>
    %19 = vector.broadcast %18 : vector<1x1x32xf32> to vector<2x18x32xf32>
    %20 = arith.mulf %16, %19 : vector<2x18x32xf32>
    %c0_8 = arith.constant 0 : index
    %c0_9 = arith.constant 0 : index
    %21 = vector.load %arg2[%c0_8, %c0_9] : memref<1x32xf32, #tpu.memory_space<vmem>>, vector<1x32xf32>
    %22 = vector.shape_cast %21 : vector<1x32xf32> to vector<1x1x32xf32>
    %23 = vector.broadcast %22 : vector<1x1x32xf32> to vector<2x18x32xf32>
    %24 = arith.addf %20, %23 : vector<2x18x32xf32>
    %25 = vector.shape_cast %24 : vector<2x18x32xf32> to vector<2x1x18x32xf32>
    %26 = vector.shape_cast %25 : vector<2x1x18x32xf32> to vector<2x1x18x32xf32>
    %27 = vector.broadcast %26 : vector<2x1x18x32xf32> to vector<2x4x18x32xf32>
    %28 = vector.shape_cast %27 : vector<2x4x18x32xf32> to vector<8x18x32xf32>
    %c0_10 = arith.constant 0 : index
    %c0_11 = arith.constant 0 : index
    %c0_12 = arith.constant 0 : index
    %29 = vector.load %arg3[%c0_10, %c0_11, %c0_12] : memref<8x32x48xf32, #tpu.memory_space<vmem>>, vector<8x32x48xf32>
    "tpu.trace_start"() <{level = 10 : i32, message = "gnc,gcd->gnd"}> : () -> ()
    %cst_13 = arith.constant dense<0.000000e+00> : vector<8x18x48xf32>
    %30 = tpu.matmul %28, %29, %cst_13 {dimension_numbers = #tpu.dot_dimension_numbers<[2], [1], [1], [2], [0, 0, 0, 1, 1, 2], [0], [0]>} : vector<8x18x32xf32>, vector<8x32x48xf32>, vector<8x18x48xf32> -> vector<8x18x48xf32>
    "tpu.trace_stop"() : () -> ()
    %31 = vector.extract_strided_slice %30 {offsets = [0, 0, 0], sizes = [8, 18, 8], strides = [1, 1, 1]} : vector<8x18x48xf32> to vector<8x18x8xf32>
    %32 = vector.extract_strided_slice %30 {offsets = [0, 0, 8], sizes = [8, 18, 8], strides = [1, 1, 1]} : vector<8x18x48xf32> to vector<8x18x8xf32>
    %33 = vector.extract_strided_slice %30 {offsets = [0, 0, 16], sizes = [8, 18, 32], strides = [1, 1, 1]} : vector<8x18x48xf32> to vector<8x18x32xf32>
    "tpu.trace_start"() <{level = 10 : i32, message = "gnd,gmd->gnm"}> : () -> ()
    %cst_14 = arith.constant dense<0.000000e+00> : vector<8x18x18xf32>
    %34 = tpu.matmul %31, %32, %cst_14 {dimension_numbers = #tpu.dot_dimension_numbers<[2], [2], [1], [1], [0, 0, 0, 1, 1, 1], [0], [0]>} : vector<8x18x8xf32>, vector<8x18x8xf32>, vector<8x18x18xf32> -> vector<8x18x18xf32>
    "tpu.trace_stop"() : () -> ()
    %c0_15 = arith.constant 0 : index
    %c0_16 = arith.constant 0 : index
    %35 = vector.load %arg5[%c0_15, %c0_16] : memref<18x18xf32, #tpu.memory_space<vmem>>, vector<18x18xf32>
    %36 = vector.shape_cast %35 : vector<18x18xf32> to vector<1x18x18xf32>
    %37 = vector.broadcast %36 : vector<1x18x18xf32> to vector<8x18x18xf32>
    %38 = arith.mulf %34, %37 : vector<8x18x18xf32>
    %cst_17 = arith.constant dense<0xFF800000> : vector<8x18xf32>
    %39 = vector.multi_reduction <maximumf>, %38, %cst_17 [2] : vector<8x18x18xf32> to vector<8x18xf32>
    %40 = vector.shape_cast %39 : vector<8x18xf32> to vector<8x18x1xf32>
    %41 = vector.broadcast %40 : vector<8x18x1xf32> to vector<8x18x18xf32>
    %42 = arith.subf %38, %41 : vector<8x18x18xf32>
    %43 = math.exp %42 : vector<8x18x18xf32>
    %cst_18 = arith.constant dense<0.000000e+00> : vector<8x18xf32>
    %44 = vector.multi_reduction <add>, %43, %cst_18 [2] : vector<8x18x18xf32> to vector<8x18xf32>
    %45 = vector.shape_cast %44 : vector<8x18xf32> to vector<8x18x1xf32>
    %46 = tpu.reciprocal %45 {approx = true} : vector<8x18x1xf32> -> vector<8x18x1xf32>
    %47 = vector.broadcast %46 : vector<8x18x1xf32> to vector<8x18x18xf32>
    %48 = arith.mulf %43, %47 : vector<8x18x18xf32>
    "tpu.trace_start"() <{level = 10 : i32, message = "gnm,gmc->gnc"}> : () -> ()
    %cst_19 = arith.constant dense<0.000000e+00> : vector<8x18x32xf32>
    %49 = tpu.matmul %48, %33, %cst_19 {dimension_numbers = #tpu.dot_dimension_numbers<[2], [1], [1], [2], [0, 0, 0, 1, 1, 2], [0], [0]>} : vector<8x18x18xf32>, vector<8x18x32xf32>, vector<8x18x32xf32> -> vector<8x18x32xf32>
    "tpu.trace_stop"() : () -> ()
    %50 = vector.shape_cast %49 : vector<8x18x32xf32> to vector<2x4x18x32xf32>
    %cst_20 = arith.constant dense<0.000000e+00> : vector<2x18x32xf32>
    %51 = vector.multi_reduction <add>, %50, %cst_20 [1] : vector<2x4x18x32xf32> to vector<2x18x32xf32>
    %52 = arith.addf %0, %51 : vector<2x18x32xf32>
    %c0_21 = arith.constant 0 : index
    %c0_22 = arith.constant 0 : index
    %53 = vector.load %arg4[%c0_21, %c0_22] : memref<1x32xf32, #tpu.memory_space<vmem>>, vector<1x32xf32>
    %54 = vector.shape_cast %53 : vector<1x32xf32> to vector<1x1x32xf32>
    %55 = vector.broadcast %54 : vector<1x1x32xf32> to vector<2x18x32xf32>
    %56 = arith.addf %52, %55 : vector<2x18x32xf32>
    %57 = vector.extract_strided_slice %48 {offsets = [0, 0, 0], sizes = [8, 1, 18], strides = [1, 1, 1]} : vector<8x18x18xf32> to vector<8x1x18xf32>
    %58 = vector.shape_cast %57 : vector<8x1x18xf32> to vector<2x4x1x18xf32>
    %cst_23 = arith.constant dense<0.000000e+00> : vector<2x1x18xf32>
    %59 = vector.multi_reduction <add>, %58, %cst_23 [1] : vector<2x4x1x18xf32> to vector<2x1x18xf32>
    %cst_24 = arith.constant 4.000000e+00 : f32
    %60 = vector.broadcast %cst_24 : f32 to vector<2x1x18xf32>
    %61 = arith.divf %59, %60 : vector<2x1x18xf32>
    %62 = vector.extract_strided_slice %48 {offsets = [0, 1, 0], sizes = [8, 1, 18], strides = [1, 1, 1]} : vector<8x18x18xf32> to vector<8x1x18xf32>
    %63 = vector.shape_cast %62 : vector<8x1x18xf32> to vector<2x4x1x18xf32>
    %cst_25 = arith.constant dense<0.000000e+00> : vector<2x1x18xf32>
    %64 = vector.multi_reduction <add>, %63, %cst_25 [1] : vector<2x4x1x18xf32> to vector<2x1x18xf32>
    %cst_26 = arith.constant 4.000000e+00 : f32
    %65 = vector.broadcast %cst_26 : f32 to vector<2x1x18xf32>
    %66 = arith.divf %64, %65 : vector<2x1x18xf32>
    %67 = vector.extract_strided_slice %61 {offsets = [0, 0, 2], sizes = [2, 1, 16], strides = [1, 1, 1]} : vector<2x1x18xf32> to vector<2x1x16xf32>
    %c0_27 = arith.constant 0 : index
    %c0_28 = arith.constant 0 : index
    %c0_29 = arith.constant 0 : index
    %68 = vector.load %arg8[%c0_27, %c0_28, %c0_29] : memref<2x1x16xf32, #tpu.memory_space<vmem>>, vector<2x1x16xf32>
    tpu.vector_store %arg8[%c0_27, %c0_28, %c0_29], %67 {strides = array<i32>} : memref<2x1x16xf32, #tpu.memory_space<vmem>>, vector<2x1x16xf32>,
    %69 = vector.extract_strided_slice %66 {offsets = [0, 0, 2], sizes = [2, 1, 16], strides = [1, 1, 1]} : vector<2x1x18xf32> to vector<2x1x16xf32>
    %c0_30 = arith.constant 0 : index
    %c0_31 = arith.constant 0 : index
    %c0_32 = arith.constant 0 : index
    %70 = vector.load %arg9[%c0_30, %c0_31, %c0_32] : memref<2x1x16xf32, #tpu.memory_space<vmem>>, vector<2x1x16xf32>
    tpu.vector_store %arg9[%c0_30, %c0_31, %c0_32], %69 {strides = array<i32>} : memref<2x1x16xf32, #tpu.memory_space<vmem>>, vector<2x1x16xf32>,
    %71 = tpu.iota {dimensions = array<i32: 0>} : vector<18x18xi32>
    %72 = tpu.iota {dimensions = array<i32: 1>} : vector<18x18xi32>
    %73 = arith.cmpi eq, %71, %72 : vector<18x18xi32>
    %74 = arith.extui %73 : vector<18x18xi1> to vector<18x18xi32>
    %75 = arith.sitofp %74 : vector<18x18xi32> to vector<18x18xf32>
    %76 = arith.addf %61, %66 : vector<2x1x18xf32>
    %77 = arith.cmpf ogt, %66, %61 : vector<2x1x18xf32>
    %78 = arith.extui %77 : vector<2x1x18xi1> to vector<2x1x18xi32>
    %79 = arith.sitofp %78 : vector<2x1x18xi32> to vector<2x1x18xf32>
    %80 = vector.shape_cast %75 : vector<18x18xf32> to vector<1x18x18xf32>
    %81 = vector.broadcast %76 : vector<2x1x18xf32> to vector<2x18x18xf32>
    %82 = vector.broadcast %80 : vector<1x18x18xf32> to vector<2x18x18xf32>
    %83 = arith.mulf %81, %82 : vector<2x18x18xf32>
    %cst_33 = arith.constant dense<0.000000e+00> : vector<2x18xf32>
    %84 = vector.multi_reduction <add>, %83, %cst_33 [2] : vector<2x18x18xf32> to vector<2x18xf32>
    %85 = vector.shape_cast %84 : vector<2x18xf32> to vector<2x18x1xf32>
    %86 = vector.shape_cast %72 : vector<18x18xi32> to vector<1x18x18xi32>
    %c2_i32 = arith.constant 2 : i32
    %87 = vector.broadcast %c2_i32 : i32 to vector<1x18x18xi32>
    %88 = arith.cmpi sge, %86, %87 : vector<1x18x18xi32>
    %89 = vector.broadcast %76 : vector<2x1x18xf32> to vector<2x18x18xf32>
    %90 = vector.broadcast %85 : vector<2x18x1xf32> to vector<2x18x18xf32>
    %91 = arith.cmpf ogt, %89, %90 : vector<2x18x18xf32>
    %92 = vector.broadcast %76 : vector<2x1x18xf32> to vector<2x18x18xf32>
    %93 = vector.broadcast %85 : vector<2x18x1xf32> to vector<2x18x18xf32>
    %94 = arith.cmpf oeq, %92, %93 : vector<2x18x18xf32>
    %95 = vector.shape_cast %72 : vector<18x18xi32> to vector<1x18x18xi32>
    %96 = vector.shape_cast %71 : vector<18x18xi32> to vector<1x18x18xi32>
    %97 = arith.cmpi slt, %95, %96 : vector<1x18x18xi32>
    %98 = vector.broadcast %97 : vector<1x18x18xi1> to vector<2x18x18xi1>
    %99 = arith.andi %94, %98 : vector<2x18x18xi1>
    %100 = arith.ori %91, %99 : vector<2x18x18xi1>
    %101 = vector.broadcast %88 : vector<1x18x18xi1> to vector<2x18x18xi1>
    %102 = arith.andi %101, %100 : vector<2x18x18xi1>
    %103 = arith.extui %102 : vector<2x18x18xi1> to vector<2x18x18xi32>
    %104 = arith.sitofp %103 : vector<2x18x18xi32> to vector<2x18x18xf32>
    %cst_34 = arith.constant dense<0.000000e+00> : vector<2x18xf32>
    %105 = vector.multi_reduction <add>, %104, %cst_34 [2] : vector<2x18x18xf32> to vector<2x18xf32>
    %106 = vector.shape_cast %105 : vector<2x18xf32> to vector<2x18x1xf32>
    %107 = vector.broadcast %79 : vector<2x1x18xf32> to vector<2x18x18xf32>
    %108 = arith.mulf %104, %107 : vector<2x18x18xf32>
    %cst_35 = arith.constant dense<0.000000e+00> : vector<2x18xf32>
    %109 = vector.multi_reduction <add>, %108, %cst_35 [2] : vector<2x18x18xf32> to vector<2x18xf32>
    %110 = vector.shape_cast %109 : vector<2x18xf32> to vector<2x18x1xf32>
    %111 = arith.subf %106, %110 : vector<2x18x1xf32>
    %112 = vector.shape_cast %75 : vector<18x18xf32> to vector<1x18x18xf32>
    %113 = vector.broadcast %79 : vector<2x1x18xf32> to vector<2x18x18xf32>
    %114 = vector.broadcast %112 : vector<1x18x18xf32> to vector<2x18x18xf32>
    %115 = arith.mulf %113, %114 : vector<2x18x18xf32>
    %cst_36 = arith.constant dense<0.000000e+00> : vector<2x18xf32>
    %116 = vector.multi_reduction <add>, %115, %cst_36 [2] : vector<2x18x18xf32> to vector<2x18xf32>
    %117 = vector.shape_cast %116 : vector<2x18xf32> to vector<2x18x1xf32>
    %cst_37 = arith.constant 5.000000e-01 : f32
    %118 = vector.broadcast %cst_37 : f32 to vector<2x18x1xf32>
    %119 = arith.cmpf ogt, %117, %118 : vector<2x18x1xf32>
    %cst_38 = arith.constant 1.500000e+01 : f32
    %120 = vector.broadcast %cst_38 : f32 to vector<2x18x1xf32>
    %121 = arith.subf %120, %111 : vector<2x18x1xf32>
    %122 = arith.select %119, %110, %121 : vector<2x18x1xi1>, vector<2x18x1xf32>
    %123 = vector.shape_cast %75 : vector<18x18xf32> to vector<1x18x18xf32>
    %124 = vector.broadcast %122 : vector<2x18x1xf32> to vector<2x18x18xf32>
    %125 = vector.broadcast %123 : vector<1x18x18xf32> to vector<2x18x18xf32>
    %126 = arith.mulf %124, %125 : vector<2x18x18xf32>
    %cst_39 = arith.constant dense<0.000000e+00> : vector<2x18xf32>
    %127 = vector.multi_reduction <add>, %126, %cst_39 [1] : vector<2x18x18xf32> to vector<2x18xf32>
    %128 = vector.shape_cast %127 : vector<2x18xf32> to vector<2x1x18xf32>
    %129 = tpu.iota {dimensions = array<i32: 2>} : vector<1x1x18xi32>
    %c0_i32 = arith.constant 0 : i32
    %130 = vector.broadcast %c0_i32 : i32 to vector<1x1x18xi32>
    %131 = arith.cmpi eq, %129, %130 : vector<1x1x18xi32>
    %c2_i32_40 = arith.constant 2 : i32
    %132 = vector.broadcast %c2_i32_40 : i32 to vector<1x1x18xi32>
    %133 = arith.cmpi sge, %129, %132 : vector<1x1x18xi32>
    %cst_41 = arith.constant 7.000000e+00 : f32
    %134 = vector.broadcast %cst_41 : f32 to vector<2x1x18xf32>
    %135 = arith.cmpf ole, %128, %134 : vector<2x1x18xf32>
    %136 = vector.broadcast %133 : vector<1x1x18xi1> to vector<2x1x18xi1>
    %137 = arith.andi %136, %135 : vector<2x1x18xi1>
    %cst_42 = arith.constant 1.000000e+00 : f32
    %138 = vector.broadcast %cst_42 : f32 to vector<2x1x18xf32>
    %139 = arith.addf %128, %138 : vector<2x1x18xf32>
    %cst_43 = arith.constant -1.000000e+00 : f32
    %140 = vector.broadcast %cst_43 : f32 to vector<2x1x18xf32>
    %141 = arith.select %137, %139, %140 : vector<2x1x18xi1>, vector<2x1x18xf32>
    %cst_44 = arith.constant 0.000000e+00 : f32
    %142 = vector.shape_cast %131 : vector<1x1x18xi1> to vector<1x1x18xi1>
    %143 = vector.broadcast %142 : vector<1x1x18xi1> to vector<2x1x18xi1>
    %144 = vector.broadcast %cst_44 : f32 to vector<2x1x18xf32>
    %145 = arith.select %143, %144, %141 : vector<2x1x18xi1>, vector<2x1x18xf32>
    %c1_i32 = arith.constant 1 : i32
    %146 = vector.broadcast %c1_i32 : i32 to vector<1x1x18xi32>
    %147 = arith.cmpi eq, %129, %146 : vector<1x1x18xi32>
    %c2_i32_45 = arith.constant 2 : i32
    %148 = vector.broadcast %c2_i32_45 : i32 to vector<1x1x18xi32>
    %149 = arith.cmpi sge, %129, %148 : vector<1x1x18xi32>
    %cst_46 = arith.constant 8.000000e+00 : f32
    %150 = vector.broadcast %cst_46 : f32 to vector<2x1x18xf32>
    %151 = arith.cmpf oge, %128, %150 : vector<2x1x18xf32>
    %152 = vector.broadcast %149 : vector<1x1x18xi1> to vector<2x1x18xi1>
    %153 = arith.andi %152, %151 : vector<2x1x18xi1>
    %cst_47 = arith.constant 7.000000e+00 : f32
    %154 = vector.broadcast %cst_47 : f32 to vector<2x1x18xf32>
    %155 = arith.subf %128, %154 : vector<2x1x18xf32>
    %cst_48 = arith.constant -1.000000e+00 : f32
    %156 = vector.broadcast %cst_48 : f32 to vector<2x1x18xf32>
    %157 = arith.select %153, %155, %156 : vector<2x1x18xi1>, vector<2x1x18xf32>
    %cst_49 = arith.constant 0.000000e+00 : f32
    %158 = vector.shape_cast %147 : vector<1x1x18xi1> to vector<1x1x18xi1>
    %159 = vector.broadcast %158 : vector<1x1x18xi1> to vector<2x1x18xi1>
    %160 = vector.broadcast %cst_49 : f32 to vector<2x1x18xf32>
    %161 = arith.select %159, %160, %157 : vector<2x1x18xi1>, vector<2x1x18xf32>
    %162 = tpu.iota {dimensions = array<i32: 1>} : vector<1x9x18xi32>
    %163 = arith.sitofp %162 : vector<1x9x18xi32> to vector<1x9x18xf32>
    %164 = vector.broadcast %163 : vector<1x9x18xf32> to vector<2x9x18xf32>
    %165 = vector.broadcast %145 : vector<2x1x18xf32> to vector<2x9x18xf32>
    %166 = arith.cmpf oeq, %164, %165 : vector<2x9x18xf32>
    %167 = arith.extui %166 : vector<2x9x18xi1> to vector<2x9x18xi32>
    %168 = arith.sitofp %167 : vector<2x9x18xi32> to vector<2x9x18xf32>
    %169 = vector.broadcast %163 : vector<1x9x18xf32> to vector<2x9x18xf32>
    %170 = vector.broadcast %161 : vector<2x1x18xf32> to vector<2x9x18xf32>
    %171 = arith.cmpf oeq, %169, %170 : vector<2x9x18xf32>
    %172 = arith.extui %171 : vector<2x9x18xi1> to vector<2x9x18xi32>
    %173 = arith.sitofp %172 : vector<2x9x18xi32> to vector<2x9x18xf32>
    "tpu.trace_start"() <{level = 10 : i32, message = "bpn,bnc->bpc"}> : () -> ()
    %cst_50 = arith.constant dense<0.000000e+00> : vector<2x9x32xf32>
    %174 = tpu.matmul %168, %56, %cst_50 {dimension_numbers = #tpu.dot_dimension_numbers<[2], [1], [1], [2], [0, 0, 0, 1, 1, 2], [0], [0]>} : vector<2x9x18xf32>, vector<2x18x32xf32>, vector<2x9x32xf32> -> vector<2x9x32xf32>
    "tpu.trace_stop"() : () -> ()
    %c0_51 = arith.constant 0 : index
    %c0_52 = arith.constant 0 : index
    %c0_53 = arith.constant 0 : index
    %175 = vector.load %arg6[%c0_51, %c0_52, %c0_53] : memref<2x9x32xf32, #tpu.memory_space<vmem>>, vector<2x9x32xf32>
    tpu.vector_store %arg6[%c0_51, %c0_52, %c0_53], %174 {strides = array<i32>} : memref<2x9x32xf32, #tpu.memory_space<vmem>>, vector<2x9x32xf32>,
    "tpu.trace_start"() <{level = 10 : i32, message = "bpn,bnc->bpc"}> : () -> ()
    %cst_54 = arith.constant dense<0.000000e+00> : vector<2x9x32xf32>
    %176 = tpu.matmul %173, %56, %cst_54 {dimension_numbers = #tpu.dot_dimension_numbers<[2], [1], [1], [2], [0, 0, 0, 1, 1, 2], [0], [0]>} : vector<2x9x18xf32>, vector<2x18x32xf32>, vector<2x9x32xf32> -> vector<2x9x32xf32>
    "tpu.trace_stop"() : () -> ()
    %c0_55 = arith.constant 0 : index
    %c0_56 = arith.constant 0 : index
    %c0_57 = arith.constant 0 : index
    %177 = vector.load %arg7[%c0_55, %c0_56, %c0_57] : memref<2x9x32xf32, #tpu.memory_space<vmem>>, vector<2x9x32xf32>
    tpu.vector_store %arg7[%c0_55, %c0_56, %c0_57], %176 {strides = array<i32>} : memref<2x9x32xf32, #tpu.memory_space<vmem>>, vector<2x9x32xf32>,
    return
  }
}

</mosaic_0001>

<llo_original>
// kernel: _run_block.1
$region0: #{_run_block.1}
  #allocation0 [shape = 'u32[]', space=smem, size = 0x4, offset = 0x4, fixed_abs, tag = 'smem constant byte address 0x4 - core index']
  #allocation1 [shape = 'u32[72,128]{1,0:T(1,128)}', space=vmem, size = 0x9000, scoped, tag = 'internal scratch']
  %s0 = inlined_call_operand.vmem [shape: f32[2,18,32], index: 0, kind: input, shape index: {}]
  %s1 = inlined_call_operand.vmem [shape: f32[1,32], index: 1, kind: input, shape index: {}]
  %s2 = inlined_call_operand.vmem [shape: f32[1,32], index: 2, kind: input, shape index: {}]
  %s3 = inlined_call_operand.hbm [shape: f32[8,32,48], index: 3, kind: input, shape index: {}]
  %s4 = inlined_call_operand.vmem [shape: f32[1,32], index: 4, kind: input, shape index: {}]
  %s5 = inlined_call_operand.vmem [shape: f32[18,18], index: 5, kind: input, shape index: {}]
  %s6 = inlined_call_operand.vmem [shape: f32[2,9,32], index: 6, kind: output, shape index: {0}]
  %s7 = inlined_call_operand.vmem [shape: f32[2,9,32], index: 7, kind: output, shape index: {1}]
  %s8 = inlined_call_operand.hbm [shape: f32[2,1,16], index: 8, kind: output, shape index: {2}]
  %s9 = inlined_call_operand.hbm [shape: f32[2,1,16], index: 9, kind: output, shape index: {3}]
  %10 = xla_tuple %s6, %s7, %s8, %s9
  %s11 = sld [smem:[#allocation0]]
  $region62: #{_run_block.1} parent=0
    _
  %s13 = ssub.s32 1, %s11
  %s14 = scalar_select 0, %s13, %s11
  $region1: #{_run_block.1} parent=0
    #allocation2 [shape = 'u8[131072]{0}', space=vmem, size = 0x20000, scoped, tag = 'input window, operand 3, single buffered']
    #allocation3 [shape = 's32[1]{0}', space=sflag, size = 0x4, scoped, tag = 'scoped memory for _run_block.1']
    #allocation4 [shape = 's32[1]{0}', space=sflag, size = 0x4, scoped, tag = 'scoped memory for _run_block.1']
    #allocation5 [shape = 'u8[1024]{0}', space=vmem, size = 0x400, scoped, tag = 'output window, operand 2, single buffered']
    #allocation6 [shape = 'u8[1024]{0}', space=vmem, size = 0x400, scoped, tag = 'output window, operand 3, single buffered']
    #allocation7 [shape = 's32[1]{0}', space=sflag, size = 0x4, scoped, tag = 'scoped memory for _run_block.1']
    %15 = vsyncpa [#allocation3], 0
    %16 = vsyncpa [#allocation4], 0
    %17 = vsyncpa [#allocation7], 0
    // Predicated region
    $region2: #{_run_block.1} parent=1 // pred_check
      _
    $region3: #{_run_block.1} parent=1 // pred_check_branch
      %19 = sbr.rel (0) target = $region5
    $region4: #{_run_block.1} parent=1 // pred_region
      _
    $region5: #{_run_block.1} parent=1 // pred_fallthru
      _
    // Predicated region
    $region6: #{_run_block.1} parent=1 // pred_check
      _
    $region7: #{_run_block.1} parent=1 // pred_check_branch
      %21 = sbr.rel (0) target = $region9
    $region8: #{_run_block.1} parent=1 // pred_region
      _
    $region9: #{_run_block.1} parent=1 // pred_fallthru
      _
    // Predicated region
    $region10: #{_run_block.1} parent=1 // pred_check
      _
    $region11: #{_run_block.1} parent=1 // pred_check_branch
      %23 = sbr.rel (0) target = $region13
    $region12: #{_run_block.1} parent=1 // pred_region
      _
    $region13: #{_run_block.1} parent=1 // pred_fallthru
      _
    // Predicated region
    $region14: #{_run_block.1} parent=1 // pred_check
      _
    $region15: #{_run_block.1} parent=1 // pred_check_branch
      %25 = sbr.rel (0) target = $region17
    $region16: #{_run_block.1} parent=1 // pred_region
      %27 = vsyncadd [#allocation3], 0
      %s28 = sshll.u32 %s3, 4
      %s29 = int_to_ptr.hbm [resolvable:$true] %s28
      %s30 = sshll.u32 [#allocation2], 4
      %s31 = int_to_ptr.vmem [resolvable:$true] %s30
      %36 = dma.hbm_to_vmem [thread:$0]  %s29, 4096, %s31, [#allocation3], 128, 128, 8
    $region17: #{_run_block.1} parent=1 // pred_fallthru
      _
    // Predicated region
    $region18: #{_run_block.1} parent=1 // pred_check
      _
    $region19: #{_run_block.1} parent=1 // pred_check_branch
      %38 = sbr.rel (0) target = $region21
    $region20: #{_run_block.1} parent=1 // pred_region
      _
    $region21: #{_run_block.1} parent=1 // pred_fallthru
      _
    // Predicated region
    $region22: #{_run_block.1} parent=1 // pred_check
      _
    $region23: #{_run_block.1} parent=1 // pred_check_branch
      %40 = sbr.rel (0) target = $region25
    $region24: #{_run_block.1} parent=1 // pred_region
      _
    $region25: #{_run_block.1} parent=1 // pred_fallthru
      _
    // Predicated region
    $region26: #{_run_block.1} parent=1 // pred_check
      _
    $region27: #{_run_block.1} parent=1 // pred_check_branch
      %42 = sbr.rel (0) target = $region29
    $region28: #{_run_block.1} parent=1 // pred_region
      %44 = dma.done [#allocation3], 4096
    $region29: #{_run_block.1} parent=1 // pred_fallthru
      _
    %v45 = vld [vmem:[%s0] sm:$0xff]
    %v46 = vld [vmem:[%s0 + $0x8] sm:$0xff]
    %v47 = vld [vmem:[%s0 + $0x10] sm:$0x3]
    %v48 = vld [vmem:[%s0 + $0x18] sm:$0xff]
    %v49 = vld [vmem:[%s0 + $0x20] sm:$0xff]
    %v50 = vld [vmem:[%s0 + $0x28] sm:$0x3]
    %vm51 = vcmask 261120
    %v52 = vsel %vm51, %v45, 0.0
    %53 = vadd.xlane.f32.xlu0 %v52
    %v54 = vpop.xlane.xlu0 %53
    %v55 = vsel %vm51, %v46, 0.0
    %56 = vadd.xlane.f32.xlu0 %v55
    %v57 = vpop.xlane.xlu0 %56
    %vm58 = vcmask 254976
    %v59 = vsel %vm58, %v47, 0.0
    %60 = vadd.xlane.f32.xlu0 %v59
    %v61 = vpop.xlane.xlu0 %60
    %v62 = vsel %vm51, %v48, 0.0
    %63 = vadd.xlane.f32.xlu0 %v62
    %v64 = vpop.xlane.xlu0 %63
    %v65 = vsel %vm51, %v49, 0.0
    %66 = vadd.xlane.f32.xlu0 %v65
    %v67 = vpop.xlane.xlu0 %66
    %v68 = vsel %vm58, %v50, 0.0
    %69 = vadd.xlane.f32.xlu0 %v68
    %v70 = vpop.xlane.xlu0 %69
    %v71 = vrcp.pop 32.0
    %v72 = vmul.f32 32.0, %v71
    %v73 = vsub.f32 1.0, %v72
    %v74 = vmul.f32 %v71, %v73
    %v75 = vadd.f32 %v71, %v74
    %vm76 = vweird.f32 %v71
    %v77 = vsel %vm76, %v71, %v75
    %v78 = vmul.f32 %v54, %v77
    %v79 = vmul.f32 %v57, %v77
    %v80 = vmul.f32 %v61, %v77
    %v81 = vmul.f32 %v64, %v77
    %v82 = vmul.f32 %v67, %v77
    %v83 = vmul.f32 %v70, %v77
    %v84 = vsub.f32 %v45, %v78
    %v85 = vsub.f32 %v46, %v79
    %v86 = vsub.f32 %v47, %v80
    %v87 = vsub.f32 %v48, %v81
    %v88 = vsub.f32 %v49, %v82
    %v89 = vsub.f32 %v50, %v83
    %v90 = vmul.f32 %v84, %v84
    %v91 = vmul.f32 %v85, %v85
    %v92 = vmul.f32 %v86, %v86
    %v93 = vmul.f32 %v87, %v87
    %v94 = vmul.f32 %v88, %v88
    %v95 = vmul.f32 %v89, %v89
    %v96 = vsel %vm51, %v90, 0.0
    %97 = vadd.xlane.f32.xlu0 %v96
    %v98 = vpop.xlane.xlu0 %97
    %v99 = vsel %vm51, %v91, 0.0
    %100 = vadd.xlane.f32.xlu0 %v99
    %v101 = vpop.xlane.xlu0 %100
    %v102 = vsel %vm58, %v92, 0.0
    %103 = vadd.xlane.f32.xlu0 %v102
    %v104 = vpop.xlane.xlu0 %103
    %v105 = vsel %vm51, %v93, 0.0
    %106 = vadd.xlane.f32.xlu0 %v105
    %v107 = vpop.xlane.xlu0 %106
    %v108 = vsel %vm51, %v94, 0.0
    %109 = vadd.xlane.f32.xlu0 %v108
    %v110 = vpop.xlane.xlu0 %109
    %v111 = vsel %vm58, %v95, 0.0
    %112 = vadd.xlane.f32.xlu0 %v111
    %v113 = vpop.xlane.xlu0 %112
    %v114 = vmul.f32 %v98, %v77
    %v115 = vmul.f32 %v101, %v77
    %v116 = vmul.f32 %v104, %v77
    %v117 = vmul.f32 %v107, %v77
    %v118 = vmul.f32 %v110, %v77
    %v119 = vmul.f32 %v113, %v77
    %v120 = vadd.f32 %v114, 1e-05
    %v121 = vadd.f32 %v115, 1e-05
    %v122 = vadd.f32 %v116, 1e-05
    %v123 = vadd.f32 %v117, 1e-05
    %v124 = vadd.f32 %v118, 1e-05
    %v125 = vadd.f32 %v119, 1e-05
    %v126 = vrsqrt.pop %v120
    %v127 = vmul.f32 %v126, %v120
    %v128 = vmul.f32 %v127, %v126
    %v129 = vmul.f32 0.5, %v128
    %v130 = vsub.f32 1.5, %v129
    %v131 = vmul.f32 %v126, %v130
    %vm132 = vweird.f32 %v120
    %vm133 = vweird.f32 %v126
    %vm134 = vmor %vm132, %vm133
    %v135 = vsel %vm134, %v126, %v131
    %v136 = vrsqrt.pop %v121
    %v137 = vmul.f32 %v136, %v121
    %v138 = vmul.f32 %v137, %v136
    %v139 = vmul.f32 0.5, %v138
    %v140 = vsub.f32 1.5, %v139
    %v141 = vmul.f32 %v136, %v140
    %vm142 = vweird.f32 %v121
    %vm143 = vweird.f32 %v136
    %vm144 = vmor %vm142, %vm143
    %v145 = vsel %vm144, %v136, %v141
    %v146 = vrsqrt.pop %v122
    %v147 = vmul.f32 %v146, %v122
    %v148 = vmul.f32 %v147, %v146
    %v149 = vmul.f32 0.5, %v148
    %v150 = vsub.f32 1.5, %v149
    %v151 = vmul.f32 %v146, %v150
    %vm152 = vweird.f32 %v122
    %vm153 = vweird.f32 %v146
    %vm154 = vmor %vm152, %vm153
    %v155 = vsel %vm154, %v146, %v151
    %v156 = vrsqrt.pop %v123
    %v157 = vmul.f32 %v156, %v123
    %v158 = vmul.f32 %v157, %v156
    %v159 = vmul.f32 0.5, %v158
    %v160 = vsub.f32 1.5, %v159
    %v161 = vmul.f32 %v156, %v160
    %vm162 = vweird.f32 %v123
    %vm163 = vweird.f32 %v156
    %vm164 = vmor %vm162, %vm163
    %v165 = vsel %vm164, %v156, %v161
    %v166 = vrsqrt.pop %v124
    %v167 = vmul.f32 %v166, %v124
    %v168 = vmul.f32 %v167, %v166
    %v169 = vmul.f32 0.5, %v168
    %v170 = vsub.f32 1.5, %v169
    %v171 = vmul.f32 %v166, %v170
    %vm172 = vweird.f32 %v124
    %vm173 = vweird.f32 %v166
    %vm174 = vmor %vm172, %vm173
    %v175 = vsel %vm174, %v166, %v171
    %v176 = vrsqrt.pop %v125
    %v177 = vmul.f32 %v176, %v125
    %v178 = vmul.f32 %v177, %v176
    %v179 = vmul.f32 0.5, %v178
    %v180 = vsub.f32 1.5, %v179
    %v181 = vmul.f32 %v176, %v180
    %vm182 = vweird.f32 %v125
    %vm183 = vweird.f32 %v176
    %vm184 = vmor %vm182, %vm183
    %v185 = vsel %vm184, %v176, %v181
    %v186 = vmul.f32 %v84, %v135
    %v187 = vmul.f32 %v85, %v145
    %v188 = vmul.f32 %v86, %v155
    %v189 = vmul.f32 %v87, %v165
    %v190 = vmul.f32 %v88, %v175
    %v191 = vmul.f32 %v89, %v185
    %v192 = vld [vmem:[%s1] sm:$0x1]
    %v194 = vperm.slane %v192, 0
    %v196 = vmul.f32 %v186, %v194
    %v197 = vmul.f32 %v187, %v194
    %v198 = vmul.f32 %v188, %v194
    %v199 = vmul.f32 %v189, %v194
    %v200 = vmul.f32 %v190, %v194
    %v201 = vmul.f32 %v191, %v194
    %v202 = vld [vmem:[%s2] sm:$0x1]
    %v204 = vperm.slane %v202, 0
    %v206 = vadd.f32 %v196, %v204
    %v207 = vadd.f32 %v197, %v204
    %v208 = vadd.f32 %v198, %v204
    %v209 = vadd.f32 %v199, %v204
    %v210 = vadd.f32 %v200, %v204
    %v211 = vadd.f32 %v201, %v204
    %v212 = vld [vmem:[#allocation2] sm:$0xff]
    %v213 = vld [vmem:[#allocation2 + $0x8] sm:$0xff]
    %v214 = vld [vmem:[#allocation2 + $0x10] sm:$0xff]
    %v215 = vld [vmem:[#allocation2 + $0x18] sm:$0xff]
    %v216 = vld [vmem:[#allocation2 + $0x20] sm:$0xff]
    %v217 = vld [vmem:[#allocation2 + $0x28] sm:$0xff]
    %v218 = vld [vmem:[#allocation2 + $0x30] sm:$0xff]
    %v219 = vld [vmem:[#allocation2 + $0x38] sm:$0xff]
    %v220 = vld [vmem:[#allocation2 + $0x40] sm:$0xff]
    %v221 = vld [vmem:[#allocation2 + $0x48] sm:$0xff]
    %v222 = vld [vmem:[#allocation2 + $0x50] sm:$0xff]
    %v223 = vld [vmem:[#allocation2 + $0x58] sm:$0xff]
    %v224 = vld [vmem:[#allocation2 + $0x60] sm:$0xff]
    %v225 = vld [vmem:[#allocation2 + $0x68] sm:$0xff]
    %v226 = vld [vmem:[#allocation2 + $0x70] sm:$0xff]
    %v227 = vld [vmem:[#allocation2 + $0x78] sm:$0xff]
    %v228 = vld [vmem:[#allocation2 + $0x80] sm:$0xff]
    %v229 = vld [vmem:[#allocation2 + $0x88] sm:$0xff]
    %v230 = vld [vmem:[#allocation2 + $0x90] sm:$0xff]
    %v231 = vld [vmem:[#allocation2 + $0x98] sm:$0xff]
    %v232 = vld [vmem:[#allocation2 + $0xa0] sm:$0xff]
    %v233 = vld [vmem:[#allocation2 + $0xa8] sm:$0xff]
    %v234 = vld [vmem:[#allocation2 + $0xb0] sm:$0xff]
    %v235 = vld [vmem:[#allocation2 + $0xb8] sm:$0xff]
    %v236 = vld [vmem:[#allocation2 + $0xc0] sm:$0xff]
    %v237 = vld [vmem:[#allocation2 + $0xc8] sm:$0xff]
    %v238 = vld [vmem:[#allocation2 + $0xd0] sm:$0xff]
    %v239 = vld [vmem:[#allocation2 + $0xd8] sm:$0xff]
    %v240 = vld [vmem:[#allocation2 + $0xe0] sm:$0xff]
    %v241 = vld [vmem:[#allocation2 + $0xe8] sm:$0xff]
    %v242 = vld [vmem:[#allocation2 + $0xf0] sm:$0xff]
    %v243 = vld [vmem:[#allocation2 + $0xf8] sm:$0xff]
    %v245 = vsel %vm51, %v206, 0
    %v248 = vsel %vm51, %v207, 0
    %v251 = vsel %vm51, %v208, 0
    %253 = vmatpush.msra.mxu0 0.0
    %254 = vmatpush.msra.mxu0 0.0
    %255 = vmatpush.msra.mxu0 0.0
    %256 = vmatpush.msra.mxu0 0.0
    %257 = vmatpush.msra.mxu0 0.0
    %258 = vmatpush.msra.mxu0 0.0
    %259 = vmatpush.msra.mxu0 0.0
    %260 = vmatpush.msra.mxu0 0.0
    %261 = vmatpush.msra.mxu0 0.0
    %262 = vmatpush.msra.mxu0 0.0
    %263 = vmatpush.msra.mxu0 0.0
    %264 = vmatpush.msra.mxu0 0.0
    %265 = vmatpush.msra.mxu0 %v215
    %266 = vmatpush.msra.mxu0 %v214
    %267 = vmatpush.msra.mxu0 %v213
    %268 = vmatpush.msra.mxu0 %v212
    %269 = vmatmul.f32.gmra.mxu0 %v245
    %v270 = vpop.f32.mrf.mxu0
    %v271 = vadd.f32 0.0, %v270
    %272 = vmatmul.f32.gmra.mxu0 %v248
    %v273 = vpop.f32.mrf.mxu0
    %v274 = vadd.f32 0.0, %v273
    %275 = vmatmul.f32.gmra.mxu0 %v251
    %v276 = vpop.f32.mrf.mxu0
    %v277 = vadd.f32 0.0, %v276
    %278 = vdwg.mxu0
    %279 = vmatpush.msra.mxu0 0.0
    %280 = vmatpush.msra.mxu0 0.0
    %281 = vmatpush.msra.mxu0 0.0
    %282 = vmatpush.msra.mxu0 0.0
    %283 = vmatpush.msra.mxu0 0.0
    %284 = vmatpush.msra.mxu0 0.0
    %285 = vmatpush.msra.mxu0 0.0
    %286 = vmatpush.msra.mxu0 0.0
    %287 = vmatpush.msra.mxu0 0.0
    %288 = vmatpush.msra.mxu0 0.0
    %289 = vmatpush.msra.mxu0 0.0
    %290 = vmatpush.msra.mxu0 0.0
    %291 = vmatpush.msra.mxu0 %v219
    %292 = vmatpush.msra.mxu0 %v218
    %293 = vmatpush.msra.mxu0 %v217
    %294 = vmatpush.msra.mxu0 %v216
    %295 = vmatmul.f32.gmra.mxu0 %v245
    %v296 = vpop.f32.mrf.mxu0
    %v297 = vadd.f32 0.0, %v296
    %298 = vmatmul.f32.gmra.mxu0 %v248
    %v299 = vpop.f32.mrf.mxu0
    %v300 = vadd.f32 0.0, %v299
    %301 = vmatmul.f32.gmra.mxu0 %v251
    %v302 = vpop.f32.mrf.mxu0
    %v303 = vadd.f32 0.0, %v302
    %304 = vdwg.mxu0
    %305 = vmatpush.msra.mxu0 0.0
    %306 = vmatpush.msra.mxu0 0.0
    %307 = vmatpush.msra.mxu0 0.0
    %308 = vmatpush.msra.mxu0 0.0
    %309 = vmatpush.msra.mxu0 0.0
    %310 = vmatpush.msra.mxu0 0.0
    %311 = vmatpush.msra.mxu0 0.0
    %312 = vmatpush.msra.mxu0 0.0
    %313 = vmatpush.msra.mxu0 0.0
    %314 = vmatpush.msra.mxu0 0.0
    %315 = vmatpush.msra.mxu0 0.0
    %316 = vmatpush.msra.mxu0 0.0
    %317 = vmatpush.msra.mxu0 %v223
    %318 = vmatpush.msra.mxu0 %v222
    %319 = vmatpush.msra.mxu0 %v221
    %320 = vmatpush.msra.mxu0 %v220
    %321 = vmatmul.f32.gmra.mxu0 %v245
    %v322 = vpop.f32.mrf.mxu0
    %v323 = vadd.f32 0.0, %v322
    %324 = vmatmul.f32.gmra.mxu0 %v248
    %v325 = vpop.f32.mrf.mxu0
    %v326 = vadd.f32 0.0, %v325
    %327 = vmatmul.f32.gmra.mxu0 %v251
    %v328 = vpop.f32.mrf.mxu0
    %v329 = vadd.f32 0.0, %v328
    %330 = vdwg.mxu0
    %331 = vmatpush.msra.mxu0 0.0
    %332 = vmatpush.msra.mxu0 0.0
    %333 = vmatpush.msra.mxu0 0.0
    %334 = vmatpush.msra.mxu0 0.0
    %335 = vmatpush.msra.mxu0 0.0
    %336 = vmatpush.msra.mxu0 0.0
    %337 = vmatpush.msra.mxu0 0.0
    %338 = vmatpush.msra.mxu0 0.0
    %339 = vmatpush.msra.mxu0 0.0
    %340 = vmatpush.msra.mxu0 0.0
    %341 = vmatpush.msra.mxu0 0.0
    %342 = vmatpush.msra.mxu0 0.0
    %343 = vmatpush.msra.mxu0 %v227
    %344 = vmatpush.msra.mxu0 %v226
    %345 = vmatpush.msra.mxu0 %v225
    %346 = vmatpush.msra.mxu0 %v224
    %347 = vmatmul.f32.gmra.mxu0 %v245
    %v348 = vpop.f32.mrf.mxu0
    %v349 = vadd.f32 0.0, %v348
    %350 = vmatmul.f32.gmra.mxu0 %v248
    %v351 = vpop.f32.mrf.mxu0
    %v352 = vadd.f32 0.0, %v351
    %353 = vmatmul.f32.gmra.mxu0 %v251
    %v354 = vpop.f32.mrf.mxu0
    %v355 = vadd.f32 0.0, %v354
    %356 = vdwg.mxu0
    %v358 = vsel %vm51, %v209, 0
    %v361 = vsel %vm51, %v210, 0
    %v364 = vsel %vm51, %v211, 0
    %366 = vmatpush.msra.mxu0 0.0
    %367 = vmatpush.msra.mxu0 0.0
    %368 = vmatpush.msra.mxu0 0.0
    %369 = vmatpush.msra.mxu0 0.0
    %370 = vmatpush.msra.mxu0 0.0
    %371 = vmatpush.msra.mxu0 0.0
    %372 = vmatpush.msra.mxu0 0.0
    %373 = vmatpush.msra.mxu0 0.0
    %374 = vmatpush.msra.mxu0 0.0
    %375 = vmatpush.msra.mxu0 0.0
    %376 = vmatpush.msra.mxu0 0.0
    %377 = vmatpush.msra.mxu0 0.0
    %378 = vmatpush.msra.mxu0 %v231
    %379 = vmatpush.msra.mxu0 %v230
    %380 = vmatpush.msra.mxu0 %v229
    %381 = vmatpush.msra.mxu0 %v228
    %382 = vmatmul.f32.gmra.mxu0 %v358
    %v383 = vpop.f32.mrf.mxu0
    %v384 = vadd.f32 0.0, %v383
    %385 = vmatmul.f32.gmra.mxu0 %v361
    %v386 = vpop.f32.mrf.mxu0
    %v387 = vadd.f32 0.0, %v386
    %388 = vmatmul.f32.gmra.mxu0 %v364
    %v389 = vpop.f32.mrf.mxu0
    %v390 = vadd.f32 0.0, %v389
    %391 = vdwg.mxu0
    %392 = vmatpush.msra.mxu0 0.0
    %393 = vmatpush.msra.mxu0 0.0
    %394 = vmatpush.msra.mxu0 0.0
    %395 = vmatpush.msra.mxu0 0.0
    %396 = vmatpush.msra.mxu0 0.0
    %397 = vmatpush.msra.mxu0 0.0
    %398 = vmatpush.msra.mxu0 0.0
    %399 = vmatpush.msra.mxu0 0.0
    %400 = vmatpush.msra.mxu0 0.0
    %401 = vmatpush.msra.mxu0 0.0
    %402 = vmatpush.msra.mxu0 0.0
    %403 = vmatpush.msra.mxu0 0.0
    %404 = vmatpush.msra.mxu0 %v235
    %405 = vmatpush.msra.mxu0 %v234
    %406 = vmatpush.msra.mxu0 %v233
    %407 = vmatpush.msra.mxu0 %v232
    %408 = vmatmul.f32.gmra.mxu0 %v358
    %v409 = vpop.f32.mrf.mxu0
    %v410 = vadd.f32 0.0, %v409
    %411 = vmatmul.f32.gmra.mxu0 %v361
    %v412 = vpop.f32.mrf.mxu0
    %v413 = vadd.f32 0.0, %v412
    %414 = vmatmul.f32.gmra.mxu0 %v364
    %v415 = vpop.f32.mrf.mxu0
    %v416 = vadd.f32 0.0, %v415
    %417 = vdwg.mxu0
    %418 = vmatpush.msra.mxu0 0.0
    %419 = vmatpush.msra.mxu0 0.0
    %420 = vmatpush.msra.mxu0 0.0
    %421 = vmatpush.msra.mxu0 0.0
    %422 = vmatpush.msra.mxu0 0.0
    %423 = vmatpush.msra.mxu0 0.0
    %424 = vmatpush.msra.mxu0 0.0
    %425 = vmatpush.msra.mxu0 0.0
    %426 = vmatpush.msra.mxu0 0.0
    %427 = vmatpush.msra.mxu0 0.0
    %428 = vmatpush.msra.mxu0 0.0
    %429 = vmatpush.msra.mxu0 0.0
    %430 = vmatpush.msra.mxu0 %v239
    %431 = vmatpush.msra.mxu0 %v238
    %432 = vmatpush.msra.mxu0 %v237
    %433 = vmatpush.msra.mxu0 %v236
    %434 = vmatmul.f32.gmra.mxu0 %v358
    %v435 = vpop.f32.mrf.mxu0
    %v436 = vadd.f32 0.0, %v435
    %437 = vmatmul.f32.gmra.mxu0 %v361
    %v438 = vpop.f32.mrf.mxu0
    %v439 = vadd.f32 0.0, %v438
    %440 = vmatmul.f32.gmra.mxu0 %v364
    %v441 = vpop.f32.mrf.mxu0
    %v442 = vadd.f32 0.0, %v441
    %443 = vdwg.mxu0
    %444 = vmatpush.msra.mxu0 0.0
    %445 = vmatpush.msra.mxu0 0.0
    %446 = vmatpush.msra.mxu0 0.0
    %447 = vmatpush.msra.mxu0 0.0
    %448 = vmatpush.msra.mxu0 0.0
    %449 = vmatpush.msra.mxu0 0.0
    %450 = vmatpush.msra.mxu0 0.0
    %451 = vmatpush.msra.mxu0 0.0
    %452 = vmatpush.msra.mxu0 0.0
    %453 = vmatpush.msra.mxu0 0.0
    %454 = vmatpush.msra.mxu0 0.0
    %455 = vmatpush.msra.mxu0 0.0
    %456 = vmatpush.msra.mxu0 %v243
    %457 = vmatpush.msra.mxu0 %v242
    %458 = vmatpush.msra.mxu0 %v241
    %459 = vmatpush.msra.mxu0 %v240
    %460 = vmatmul.f32.gmra.mxu0 %v358
    %v461 = vpop.f32.mrf.mxu0
    %v462 = vadd.f32 0.0, %v461
    %463 = vmatmul.f32.gmra.mxu0 %v361
    %v464 = vpop.f32.mrf.mxu0
    %v465 = vadd.f32 0.0, %v464
    %466 = vmatmul.f32.gmra.mxu0 %v364
    %v467 = vpop.f32.mrf.mxu0
    %v468 = vadd.f32 0.0, %v467
    %469 = vdwg.mxu0
    %473 = vrot.lane.b32.xlu0 %v271, 120
    %v474 = vpop.permute.xlu0 %473
    %475 = vrot.lane.b32.xlu0 %v274, 120
    %v476 = vpop.permute.xlu0 %475
    %477 = vrot.lane.b32.xlu0 %v277, 120
    %v478 = vpop.permute.xlu0 %477
    %vm479 = vcmask 64512
    %v480 = vsel %vm479, %v271, 0
    %v482 = vsel %vm479, %v274, 0
    %v484 = vsel %vm479, %v277, 0
    %v486 = vsel %vm479, %v474, 0
    %v488 = vsel %vm479, %v476, 0
    %v490 = vsel %vm479, %v478, 0
    %492 = vmatpush.xpose.msra.mxu0 0.0
    %493 = vmatpush.xpose.msra.mxu0 0.0
    %494 = vmatpush.xpose.msra.mxu0 0.0
    %495 = vmatpush.xpose.msra.mxu0 0.0
    %496 = vmatpush.xpose.msra.mxu0 0.0
    %497 = vmatpush.xpose.msra.mxu0 0.0
    %498 = vmatpush.xpose.msra.mxu0 0.0
    %499 = vmatpush.xpose.msra.mxu0 0.0
    %500 = vmatpush.xpose.msra.mxu0 0.0
    %501 = vmatpush.xpose.msra.mxu0 0.0
    %502 = vmatpush.xpose.msra.mxu0 0.0
    %503 = vmatpush.xpose.msra.mxu0 0.0
    %504 = vmatpush.xpose.msra.mxu0 0.0
    %505 = vmatpush.xpose.msra.mxu0 %v490
    %506 = vmatpush.xpose.msra.mxu0 %v488
    %507 = vmatpush.xpose.msra.mxu0 %v486
    %508 = vmatmul.f32.gmra.mxu0 %v480
    %v509 = vpop.f32.mrf.mxu0
    %v510 = vadd.f32 0.0, %v509
    %511 = vmatmul.f32.gmra.mxu0 %v482
    %v512 = vpop.f32.mrf.mxu0
    %v513 = vadd.f32 0.0, %v512
    %514 = vmatmul.f32.gmra.mxu0 %v484
    %v515 = vpop.f32.mrf.mxu0
    %v516 = vadd.f32 0.0, %v515
    %517 = vdwg.mxu0
    %521 = vrot.lane.b32.xlu0 %v297, 120
    %v522 = vpop.permute.xlu0 %521
    %523 = vrot.lane.b32.xlu0 %v300, 120
    %v524 = vpop.permute.xlu0 %523
    %525 = vrot.lane.b32.xlu0 %v303, 120
    %v526 = vpop.permute.xlu0 %525
    %v527 = vsel %vm479, %v297, 0
    %v529 = vsel %vm479, %v300, 0
    %v531 = vsel %vm479, %v303, 0
    %v533 = vsel %vm479, %v522, 0
    %v535 = vsel %vm479, %v524, 0
    %v537 = vsel %vm479, %v526, 0
    %539 = vmatpush.xpose.msra.mxu0 0.0
    %540 = vmatpush.xpose.msra.mxu0 0.0
    %541 = vmatpush.xpose.msra.mxu0 0.0
    %542 = vmatpush.xpose.msra.mxu0 0.0
    %543 = vmatpush.xpose.msra.mxu0 0.0
    %544 = vmatpush.xpose.msra.mxu0 0.0
    %545 = vmatpush.xpose.msra.mxu0 0.0
    %546 = vmatpush.xpose.msra.mxu0 0.0
    %547 = vmatpush.xpose.msra.mxu0 0.0
    %548 = vmatpush.xpose.msra.mxu0 0.0
    %549 = vmatpush.xpose.msra.mxu0 0.0
    %550 = vmatpush.xpose.msra.mxu0 0.0
    %551 = vmatpush.xpose.msra.mxu0 0.0
    %552 = vmatpush.xpose.msra.mxu0 %v537
    %553 = vmatpush.xpose.msra.mxu0 %v535
    %554 = vmatpush.xpose.msra.mxu0 %v533
    %555 = vmatmul.f32.gmra.mxu0 %v527
    %v556 = vpop.f32.mrf.mxu0
    %v557 = vadd.f32 0.0, %v556
    %558 = vmatmul.f32.gmra.mxu0 %v529
    %v559 = vpop.f32.mrf.mxu0
    %v560 = vadd.f32 0.0, %v559
    %561 = vmatmul.f32.gmra.mxu0 %v531
    %v562 = vpop.f32.mrf.mxu0
    %v563 = vadd.f32 0.0, %v562
    %564 = vdwg.mxu0
    %568 = vrot.lane.b32.xlu0 %v323, 120
    %v569 = vpop.permute.xlu0 %568
    %570 = vrot.lane.b32.xlu0 %v326, 120
    %v571 = vpop.permute.xlu0 %570
    %572 = vrot.lane.b32.xlu0 %v329, 120
    %v573 = vpop.permute.xlu0 %572
    %v574 = vsel %vm479, %v323, 0
    %v576 = vsel %vm479, %v326, 0
    %v578 = vsel %vm479, %v329, 0
    %v580 = vsel %vm479, %v569, 0
    %v582 = vsel %vm479, %v571, 0
    %v584 = vsel %vm479, %v573, 0
    %586 = vmatpush.xpose.msra.mxu0 0.0
    %587 = vmatpush.xpose.msra.mxu0 0.0
    %588 = vmatpush.xpose.msra.mxu0 0.0
    %589 = vmatpush.xpose.msra.mxu0 0.0
    %590 = vmatpush.xpose.msra.mxu0 0.0
    %591 = vmatpush.xpose.msra.mxu0 0.0
    %592 = vmatpush.xpose.msra.mxu0 0.0
    %593 = vmatpush.xpose.msra.mxu0 0.0
    %594 = vmatpush.xpose.msra.mxu0 0.0
    %595 = vmatpush.xpose.msra.mxu0 0.0
    %596 = vmatpush.xpose.msra.mxu0 0.0
    %597 = vmatpush.xpose.msra.mxu0 0.0
    %598 = vmatpush.xpose.msra.mxu0 0.0
    %599 = vmatpush.xpose.msra.mxu0 %v584
    %600 = vmatpush.xpose.msra.mxu0 %v582
    %601 = vmatpush.xpose.msra.mxu0 %v580
    %602 = vmatmul.f32.gmra.mxu0 %v574
    %v603 = vpop.f32.mrf.mxu0
    %v604 = vadd.f32 0.0, %v603
    %605 = vmatmul.f32.gmra.mxu0 %v576
    %v606 = vpop.f32.mrf.mxu0
    %v607 = vadd.f32 0.0, %v606
    %608 = vmatmul.f32.gmra.mxu0 %v578
    %v609 = vpop.f32.mrf.mxu0
    %v610 = vadd.f32 0.0, %v609
    %611 = vdwg.mxu0
    %615 = vrot.lane.b32.xlu0 %v349, 120
    %v616 = vpop.permute.xlu0 %615
    %617 = vrot.lane.b32.xlu0 %v352, 120
    %v618 = vpop.permute.xlu0 %617
    %619 = vrot.lane.b32.xlu0 %v355, 120
    %v620 = vpop.permute.xlu0 %619
    %v621 = vsel %vm479, %v349, 0
    %v623 = vsel %vm479, %v352, 0
    %v625 = vsel %vm479, %v355, 0
    %v627 = vsel %vm479, %v616, 0
    %v629 = vsel %vm479, %v618, 0
    %v631 = vsel %vm479, %v620, 0
    %633 = vmatpush.xpose.msra.mxu0 0.0
    %634 = vmatpush.xpose.msra.mxu0 0.0
    %635 = vmatpush.xpose.msra.mxu0 0.0
    %636 = vmatpush.xpose.msra.mxu0 0.0
    %637 = vmatpush.xpose.msra.mxu0 0.0
    %638 = vmatpush.xpose.msra.mxu0 0.0
    %639 = vmatpush.xpose.msra.mxu0 0.0
    %640 = vmatpush.xpose.msra.mxu0 0.0
    %641 = vmatpush.xpose.msra.mxu0 0.0
    %642 = vmatpush.xpose.msra.mxu0 0.0
    %643 = vmatpush.xpose.msra.mxu0 0.0
    %644 = vmatpush.xpose.msra.mxu0 0.0
    %645 = vmatpush.xpose.msra.mxu0 0.0
    %646 = vmatpush.xpose.msra.mxu0 %v631
    %647 = vmatpush.xpose.msra.mxu0 %v629
    %648 = vmatpush.xpose.msra.mxu0 %v627
    %649 = vmatmul.f32.gmra.mxu0 %v621
    %v650 = vpop.f32.mrf.mxu0
    %v651 = vadd.f32 0.0, %v650
    %652 = vmatmul.f32.gmra.mxu0 %v623
    %v653 = vpop.f32.mrf.mxu0
    %v654 = vadd.f32 0.0, %v653
    %655 = vmatmul.f32.gmra.mxu0 %v625
    %v656 = vpop.f32.mrf.mxu0
    %v657 = vadd.f32 0.0, %v656
    %658 = vdwg.mxu0
    %662 = vrot.lane.b32.xlu0 %v384, 120
    %v663 = vpop.permute.xlu0 %662
    %664 = vrot.lane.b32.xlu0 %v387, 120
    %v665 = vpop.permute.xlu0 %664
    %666 = vrot.lane.b32.xlu0 %v390, 120
    %v667 = vpop.permute.xlu0 %666
    %v668 = vsel %vm479, %v384, 0
    %v670 = vsel %vm479, %v387, 0
    %v672 = vsel %vm479, %v390, 0
    %v674 = vsel %vm479, %v663, 0
    %v676 = vsel %vm479, %v665, 0
    %v678 = vsel %vm479, %v667, 0
    %680 = vmatpush.xpose.msra.mxu0 0.0
    %681 = vmatpush.xpose.msra.mxu0 0.0
    %682 = vmatpush.xpose.msra.mxu0 0.0
    %683 = vmatpush.xpose.msra.mxu0 0.0
    %684 = vmatpush.xpose.msra.mxu0 0.0
    %685 = vmatpush.xpose.msra.mxu0 0.0
    %686 = vmatpush.xpose.msra.mxu0 0.0
    %687 = vmatpush.xpose.msra.mxu0 0.0
    %688 = vmatpush.xpose.msra.mxu0 0.0
    %689 = vmatpush.xpose.msra.mxu0 0.0
    %690 = vmatpush.xpose.msra.mxu0 0.0
    %691 = vmatpush.xpose.msra.mxu0 0.0
    %692 = vmatpush.xpose.msra.mxu0 0.0
    %693 = vmatpush.xpose.msra.mxu0 %v678
    %694 = vmatpush.xpose.msra.mxu0 %v676
    %695 = vmatpush.xpose.msra.mxu0 %v674
    %696 = vmatmul.f32.gmra.mxu0 %v668
    %v697 = vpop.f32.mrf.mxu0
    %v698 = vadd.f32 0.0, %v697
    %699 = vmatmul.f32.gmra.mxu0 %v670
    %v700 = vpop.f32.mrf.mxu0
    %v701 = vadd.f32 0.0, %v700
    %702 = vmatmul.f32.gmra.mxu0 %v672
    %v703 = vpop.f32.mrf.mxu0
    %v704 = vadd.f32 0.0, %v703
    %705 = vdwg.mxu0
    %709 = vrot.lane.b32.xlu0 %v410, 120
    %v710 = vpop.permute.xlu0 %709
    %711 = vrot.lane.b32.xlu0 %v413, 120
    %v712 = vpop.permute.xlu0 %711
    %713 = vrot.lane.b32.xlu0 %v416, 120
    %v714 = vpop.permute.xlu0 %713
    %v715 = vsel %vm479, %v410, 0
    %v717 = vsel %vm479, %v413, 0
    %v719 = vsel %vm479, %v416, 0
    %v721 = vsel %vm479, %v710, 0
    %v723 = vsel %vm479, %v712, 0
    %v725 = vsel %vm479, %v714, 0
    %727 = vmatpush.xpose.msra.mxu0 0.0
    %728 = vmatpush.xpose.msra.mxu0 0.0
    %729 = vmatpush.xpose.msra.mxu0 0.0
    %730 = vmatpush.xpose.msra.mxu0 0.0
    %731 = vmatpush.xpose.msra.mxu0 0.0
    %732 = vmatpush.xpose.msra.mxu0 0.0
    %733 = vmatpush.xpose.msra.mxu0 0.0
    %734 = vmatpush.xpose.msra.mxu0 0.0
    %735 = vmatpush.xpose.msra.mxu0 0.0
    %736 = vmatpush.xpose.msra.mxu0 0.0
    %737 = vmatpush.xpose.msra.mxu0 0.0
    %738 = vmatpush.xpose.msra.mxu0 0.0
    %739 = vmatpush.xpose.msra.mxu0 0.0
    %740 = vmatpush.xpose.msra.mxu0 %v725
    %741 = vmatpush.xpose.msra.mxu0 %v723
    %742 = vmatpush.xpose.msra.mxu0 %v721
    %743 = vmatmul.f32.gmra.mxu0 %v715
    %v744 = vpop.f32.mrf.mxu0
    %v745 = vadd.f32 0.0, %v744
    %746 = vmatmul.f32.gmra.mxu0 %v717
    %v747 = vpop.f32.mrf.mxu0
    %v748 = vadd.f32 0.0, %v747
    %749 = vmatmul.f32.gmra.mxu0 %v719
    %v750 = vpop.f32.mrf.mxu0
    %v751 = vadd.f32 0.0, %v750
    %752 = vdwg.mxu0
    %756 = vrot.lane.b32.xlu0 %v436, 120
    %v757 = vpop.permute.xlu0 %756
    %758 = vrot.lane.b32.xlu0 %v439, 120
    %v759 = vpop.permute.xlu0 %758
    %760 = vrot.lane.b32.xlu0 %v442, 120
    %v761 = vpop.permute.xlu0 %760
    %v762 = vsel %vm479, %v436, 0
    %v764 = vsel %vm479, %v439, 0
    %v766 = vsel %vm479, %v442, 0
    %v768 = vsel %vm479, %v757, 0
    %v770 = vsel %vm479, %v759, 0
    %v772 = vsel %vm479, %v761, 0
    %774 = vmatpush.xpose.msra.mxu0 0.0
    %775 = vmatpush.xpose.msra.mxu0 0.0
    %776 = vmatpush.xpose.msra.mxu0 0.0
    %777 = vmatpush.xpose.msra.mxu0 0.0
    %778 = vmatpush.xpose.msra.mxu0 0.0
    %779 = vmatpush.xpose.msra.mxu0 0.0
    %780 = vmatpush.xpose.msra.mxu0 0.0
    %781 = vmatpush.xpose.msra.mxu0 0.0
    %782 = vmatpush.xpose.msra.mxu0 0.0
    %783 = vmatpush.xpose.msra.mxu0 0.0
    %784 = vmatpush.xpose.msra.mxu0 0.0
    %785 = vmatpush.xpose.msra.mxu0 0.0
    %786 = vmatpush.xpose.msra.mxu0 0.0
    %787 = vmatpush.xpose.msra.mxu0 %v772
    %788 = vmatpush.xpose.msra.mxu0 %v770
    %789 = vmatpush.xpose.msra.mxu0 %v768
    %790 = vmatmul.f32.gmra.mxu0 %v762
    %v791 = vpop.f32.mrf.mxu0
    %v792 = vadd.f32 0.0, %v791
    %793 = vmatmul.f32.gmra.mxu0 %v764
    %v794 = vpop.f32.mrf.mxu0
    %v795 = vadd.f32 0.0, %v794
    %796 = vmatmul.f32.gmra.mxu0 %v766
    %v797 = vpop.f32.mrf.mxu0
    %v798 = vadd.f32 0.0, %v797
    %799 = vdwg.mxu0
    %803 = vrot.lane.b32.xlu0 %v462, 120
    %v804 = vpop.permute.xlu0 %803
    %805 = vrot.lane.b32.xlu0 %v465, 120
    %v806 = vpop.permute.xlu0 %805
    %807 = vrot.lane.b32.xlu0 %v468, 120
    %v808 = vpop.permute.xlu0 %807
    %v809 = vsel %vm479, %v462, 0
    %v811 = vsel %vm479, %v465, 0
    %v813 = vsel %vm479, %v468, 0
    %v815 = vsel %vm479, %v804, 0
    %v817 = vsel %vm479, %v806, 0
    %v819 = vsel %vm479, %v808, 0
    %821 = vmatpush.xpose.msra.mxu0 0.0
    %822 = vmatpush.xpose.msra.mxu0 0.0
    %823 = vmatpush.xpose.msra.mxu0 0.0
    %824 = vmatpush.xpose.msra.mxu0 0.0
    %825 = vmatpush.xpose.msra.mxu0 0.0
    %826 = vmatpush.xpose.msra.mxu0 0.0
    %827 = vmatpush.xpose.msra.mxu0 0.0
    %828 = vmatpush.xpose.msra.mxu0 0.0
    %829 = vmatpush.xpose.msra.mxu0 0.0
    %830 = vmatpush.xpose.msra.mxu0 0.0
    %831 = vmatpush.xpose.msra.mxu0 0.0
    %832 = vmatpush.xpose.msra.mxu0 0.0
    %833 = vmatpush.xpose.msra.mxu0 0.0
    %834 = vmatpush.xpose.msra.mxu0 %v819
    %835 = vmatpush.xpose.msra.mxu0 %v817
    %836 = vmatpush.xpose.msra.mxu0 %v815
    %837 = vmatmul.f32.gmra.mxu0 %v809
    %v838 = vpop.f32.mrf.mxu0
    %v839 = vadd.f32 0.0, %v838
    %840 = vmatmul.f32.gmra.mxu0 %v811
    %v841 = vpop.f32.mrf.mxu0
    %v842 = vadd.f32 0.0, %v841
    %843 = vmatmul.f32.gmra.mxu0 %v813
    %v844 = vpop.f32.mrf.mxu0
    %v845 = vadd.f32 0.0, %v844
    %846 = vdwg.mxu0
    %v847 = vld [vmem:[%s5] sm:$0xff]
    %v848 = vld [vmem:[%s5 + $0x8] sm:$0xff]
    %v849 = vld [vmem:[%s5 + $0x10] sm:$0x3]
    %v850 = vmul.f32 %v510, %v847
    %v851 = vmul.f32 %v513, %v848
    %v852 = vmul.f32 %v516, %v849
    %v853 = vmul.f32 %v557, %v847
    %v854 = vmul.f32 %v560, %v848
    %v855 = vmul.f32 %v563, %v849
    %v856 = vmul.f32 %v604, %v847
    %v857 = vmul.f32 %v607, %v848
    %v858 = vmul.f32 %v610, %v849
    %v859 = vmul.f32 %v651, %v847
    %v860 = vmul.f32 %v654, %v848
    %v861 = vmul.f32 %v657, %v849
    %v862 = vmul.f32 %v698, %v847
    %v863 = vmul.f32 %v701, %v848
    %v864 = vmul.f32 %v704, %v849
    %v865 = vmul.f32 %v745, %v847
    %v866 = vmul.f32 %v748, %v848
    %v867 = vmul.f32 %v751, %v849
    %v868 = vmul.f32 %v792, %v847
    %v869 = vmul.f32 %v795, %v848
    %v870 = vmul.f32 %v798, %v849
    %v871 = vmul.f32 %v839, %v847
    %v872 = vmul.f32 %v842, %v848
    %v873 = vmul.f32 %v845, %v849
    %vm874 = vcmask 146432
    %v875 = vsel %vm874, %v850, -inf
    %876 = vmax.xlane.f32.xlu0 %v875
    %v877 = vpop.xlane.xlu0 %876
    %v878 = vsel %vm874, %v851, -inf
    %879 = vmax.xlane.f32.xlu0 %v878
    %v880 = vpop.xlane.xlu0 %879
    %vm881 = vcmask 140288
    %v882 = vsel %vm881, %v852, -inf
    %883 = vmax.xlane.f32.xlu0 %v882
    %v884 = vpop.xlane.xlu0 %883
    %v885 = vsel %vm874, %v853, -inf
    %886 = vmax.xlane.f32.xlu0 %v885
    %v887 = vpop.xlane.xlu0 %886
    %v888 = vsel %vm874, %v854, -inf
    %889 = vmax.xlane.f32.xlu0 %v888
    %v890 = vpop.xlane.xlu0 %889
    %v891 = vsel %vm881, %v855, -inf
    %892 = vmax.xlane.f32.xlu0 %v891
    %v893 = vpop.xlane.xlu0 %892
    %v894 = vsel %vm874, %v856, -inf
    %895 = vmax.xlane.f32.xlu0 %v894
    %v896 = vpop.xlane.xlu0 %895
    %v897 = vsel %vm874, %v857, -inf
    %898 = vmax.xlane.f32.xlu0 %v897
    %v899 = vpop.xlane.xlu0 %898
    %v900 = vsel %vm881, %v858, -inf
    %901 = vmax.xlane.f32.xlu0 %v900
    %v902 = vpop.xlane.xlu0 %901
    %v903 = vsel %vm874, %v859, -inf
    %904 = vmax.xlane.f32.xlu0 %v903
    %v905 = vpop.xlane.xlu0 %904
    %v906 = vsel %vm874, %v860, -inf
    %907 = vmax.xlane.f32.xlu0 %v906
    %v908 = vpop.xlane.xlu0 %907
    %v909 = vsel %vm881, %v861, -inf
    %910 = vmax.xlane.f32.xlu0 %v909
    %v911 = vpop.xlane.xlu0 %910
    %v912 = vsel %vm874, %v862, -inf
    %913 = vmax.xlane.f32.xlu0 %v912
    %v914 = vpop.xlane.xlu0 %913
    %v915 = vsel %vm874, %v863, -inf
    %916 = vmax.xlane.f32.xlu0 %v915
    %v917 = vpop.xlane.xlu0 %916
    %v918 = vsel %vm881, %v864, -inf
    %919 = vmax.xlane.f32.xlu0 %v918
    %v920 = vpop.xlane.xlu0 %919
    %v921 = vsel %vm874, %v865, -inf
    %922 = vmax.xlane.f32.xlu0 %v921
    %v923 = vpop.xlane.xlu0 %922
    %v924 = vsel %vm874, %v866, -inf
    %925 = vmax.xlane.f32.xlu0 %v924
    %v926 = vpop.xlane.xlu0 %925
    %v927 = vsel %vm881, %v867, -inf
    %928 = vmax.xlane.f32.xlu0 %v927
    %v929 = vpop.xlane.xlu0 %928
    %v930 = vsel %vm874, %v868, -inf
    %931 = vmax.xlane.f32.xlu0 %v930
    %v932 = vpop.xlane.xlu0 %931
    %v933 = vsel %vm874, %v869, -inf
    %934 = vmax.xlane.f32.xlu0 %v933
    %v935 = vpop.xlane.xlu0 %934
    %v936 = vsel %vm881, %v870, -inf
    %937 = vmax.xlane.f32.xlu0 %v936
    %v938 = vpop.xlane.xlu0 %937
    %v939 = vsel %vm874, %v871, -inf
    %940 = vmax.xlane.f32.xlu0 %v939
    %v941 = vpop.xlane.xlu0 %940
    %v942 = vsel %vm874, %v872, -inf
    %943 = vmax.xlane.f32.xlu0 %v942
    %v944 = vpop.xlane.xlu0 %943
    %v945 = vsel %vm881, %v873, -inf
    %946 = vmax.xlane.f32.xlu0 %v945
    %v947 = vpop.xlane.xlu0 %946
    %v948 = vsub.f32 %v850, %v877
    %v949 = vsub.f32 %v851, %v880
    %v950 = vsub.f32 %v852, %v884
    %v951 = vsub.f32 %v853, %v887
    %v952 = vsub.f32 %v854, %v890
    %v953 = vsub.f32 %v855, %v893
    %v954 = vsub.f32 %v856, %v896
    %v955 = vsub.f32 %v857, %v899
    %v956 = vsub.f32 %v858, %v902
    %v957 = vsub.f32 %v859, %v905
    %v958 = vsub.f32 %v860, %v908
    %v959 = vsub.f32 %v861, %v911
    %v960 = vsub.f32 %v862, %v914
    %v961 = vsub.f32 %v863, %v917
    %v962 = vsub.f32 %v864, %v920
    %v963 = vsub.f32 %v865, %v923
    %v964 = vsub.f32 %v866, %v926
    %v965 = vsub.f32 %v867, %v929
    %v966 = vsub.f32 %v868, %v932
    %v967 = vsub.f32 %v869, %v935
    %v968 = vsub.f32 %v870, %v938
    %v969 = vsub.f32 %v871, %v941
    %v970 = vsub.f32 %v872, %v944
    %v971 = vsub.f32 %v873, %v947
    %v972 = vmul.f32 %v948, 1.442695
    %v973 = vpow.pop %v972
    %v974 = vmul.f32 %v949, 1.442695
    %v975 = vpow.pop %v974
    %v976 = vmul.f32 %v950, 1.442695
    %v977 = vpow.pop %v976
    %v978 = vmul.f32 %v951, 1.442695
    %v979 = vpow.pop %v978
    %v980 = vmul.f32 %v952, 1.442695
    %v981 = vpow.pop %v980
    %v982 = vmul.f32 %v953, 1.442695
    %v983 = vpow.pop %v982
    %v984 = vmul.f32 %v954, 1.442695
    %v985 = vpow.pop %v984
    %v986 = vmul.f32 %v955, 1.442695
    %v987 = vpow.pop %v986
    %v988 = vmul.f32 %v956, 1.442695
    %v989 = vpow.pop %v988
    %v990 = vmul.f32 %v957, 1.442695
    %v991 = vpow.pop %v990
    %v992 = vmul.f32 %v958, 1.442695
    %v993 = vpow.pop %v992
    %v994 = vmul.f32 %v959, 1.442695
    %v995 = vpow.pop %v994
    %v996 = vmul.f32 %v960, 1.442695
    %v997 = vpow.pop %v996
    %v998 = vmul.f32 %v961, 1.442695
    %v999 = vpow.pop %v998
    %v1000 = vmul.f32 %v962, 1.442695
    %v1001 = vpow.pop %v1000
    %v1002 = vmul.f32 %v963, 1.442695
    %v1003 = vpow.pop %v1002
    %v1004 = vmul.f32 %v964, 1.442695
    %v1005 = vpow.pop %v1004
    %v1006 = vmul.f32 %v965, 1.442695
    %v1007 = vpow.pop %v1006
    %v1008 = vmul.f32 %v966, 1.442695
    %v1009 = vpow.pop %v1008
    %v1010 = vmul.f32 %v967, 1.442695
    %v1011 = vpow.pop %v1010
    %v1012 = vmul.f32 %v968, 1.442695
    %v1013 = vpow.pop %v1012
    %v1014 = vmul.f32 %v969, 1.442695
    %v1015 = vpow.pop %v1014
    %v1016 = vmul.f32 %v970, 1.442695
    %v1017 = vpow.pop %v1016
    %v1018 = vmul.f32 %v971, 1.442695
    %v1019 = vpow.pop %v1018
    %v1020 = vsel %vm874, %v973, 0.0
    %1021 = vadd.xlane.f32.xlu0 %v1020
    %v1022 = vpop.xlane.xlu0 %1021
    %v1023 = vsel %vm874, %v975, 0.0
    %1024 = vadd.xlane.f32.xlu0 %v1023
    %v1025 = vpop.xlane.xlu0 %1024
    %v1026 = vsel %vm881, %v977, 0.0
    %1027 = vadd.xlane.f32.xlu0 %v1026
    %v1028 = vpop.xlane.xlu0 %1027
    %v1029 = vsel %vm874, %v979, 0.0
    %1030 = vadd.xlane.f32.xlu0 %v1029
    %v1031 = vpop.xlane.xlu0 %1030
    %v1032 = vsel %vm874, %v981, 0.0
    %1033 = vadd.xlane.f32.xlu0 %v1032
    %v1034 = vpop.xlane.xlu0 %1033
    %v1035 = vsel %vm881, %v983, 0.0
    %1036 = vadd.xlane.f32.xlu0 %v1035
    %v1037 = vpop.xlane.xlu0 %1036
    %v1038 = vsel %vm874, %v985, 0.0
    %1039 = vadd.xlane.f32.xlu0 %v1038
    %v1040 = vpop.xlane.xlu0 %1039
    %v1041 = vsel %vm874, %v987, 0.0
    %1042 = vadd.xlane.f32.xlu0 %v1041
    %v1043 = vpop.xlane.xlu0 %1042
    %v1044 = vsel %vm881, %v989, 0.0
    %1045 = vadd.xlane.f32.xlu0 %v1044
    %v1046 = vpop.xlane.xlu0 %1045
    %v1047 = vsel %vm874, %v991, 0.0
    %1048 = vadd.xlane.f32.xlu0 %v1047
    %v1049 = vpop.xlane.xlu0 %1048
    %v1050 = vsel %vm874, %v993, 0.0
    %1051 = vadd.xlane.f32.xlu0 %v1050
    %v1052 = vpop.xlane.xlu0 %1051
    %v1053 = vsel %vm881, %v995, 0.0
    %1054 = vadd.xlane.f32.xlu0 %v1053
    %v1055 = vpop.xlane.xlu0 %1054
    %v1056 = vsel %vm874, %v997, 0.0
    %1057 = vadd.xlane.f32.xlu0 %v1056
    %v1058 = vpop.xlane.xlu0 %1057
    %v1059 = vsel %vm874, %v999, 0.0
    %1060 = vadd.xlane.f32.xlu0 %v1059
    %v1061 = vpop.xlane.xlu0 %1060
    %v1062 = vsel %vm881, %v1001, 0.0
    %1063 = vadd.xlane.f32.xlu0 %v1062
    %v1064 = vpop.xlane.xlu0 %1063
    %v1065 = vsel %vm874, %v1003, 0.0
    %1066 = vadd.xlane.f32.xlu0 %v1065
    %v1067 = vpop.xlane.xlu0 %1066
    %v1068 = vsel %vm874, %v1005, 0.0
    %1069 = vadd.xlane.f32.xlu0 %v1068
    %v1070 = vpop.xlane.xlu0 %1069
    %v1071 = vsel %vm881, %v1007, 0.0
    %1072 = vadd.xlane.f32.xlu0 %v1071
    %v1073 = vpop.xlane.xlu0 %1072
    %v1074 = vsel %vm874, %v1009, 0.0
    %1075 = vadd.xlane.f32.xlu0 %v1074
    %v1076 = vpop.xlane.xlu0 %1075
    %v1077 = vsel %vm874, %v1011, 0.0
    %1078 = vadd.xlane.f32.xlu0 %v1077
    %v1079 = vpop.xlane.xlu0 %1078
    %v1080 = vsel %vm881, %v1013, 0.0
    %1081 = vadd.xlane.f32.xlu0 %v1080
    %v1082 = vpop.xlane.xlu0 %1081
    %v1083 = vsel %vm874, %v1015, 0.0
    %1084 = vadd.xlane.f32.xlu0 %v1083
    %v1085 = vpop.xlane.xlu0 %1084
    %v1086 = vsel %vm874, %v1017, 0.0
    %1087 = vadd.xlane.f32.xlu0 %v1086
    %v1088 = vpop.xlane.xlu0 %1087
    %v1089 = vsel %vm881, %v1019, 0.0
    %1090 = vadd.xlane.f32.xlu0 %v1089
    %v1091 = vpop.xlane.xlu0 %1090
    %v1092 = vrcp.pop %v1022
    %v1093 = vrcp.pop %v1025
    %v1094 = vrcp.pop %v1028
    %v1095 = vrcp.pop %v1031
    %v1096 = vrcp.pop %v1034
    %v1097 = vrcp.pop %v1037
    %v1098 = vrcp.pop %v1040
    %v1099 = vrcp.pop %v1043
    %v1100 = vrcp.pop %v1046
    %v1101 = vrcp.pop %v1049
    %v1102 = vrcp.pop %v1052
    %v1103 = vrcp.pop %v1055
    %v1104 = vrcp.pop %v1058
    %v1105 = vrcp.pop %v1061
    %v1106 = vrcp.pop %v1064
    %v1107 = vrcp.pop %v1067
    %v1108 = vrcp.pop %v1070
    %v1109 = vrcp.pop %v1073
    %v1110 = vrcp.pop %v1076
    %v1111 = vrcp.pop %v1079
    %v1112 = vrcp.pop %v1082
    %v1113 = vrcp.pop %v1085
    %v1114 = vrcp.pop %v1088
    %v1115 = vrcp.pop %v1091
    %v1116 = vmul.f32 %v973, %v1092
    %v1117 = vmul.f32 %v975, %v1093
    %v1118 = vmul.f32 %v977, %v1094
    %v1119 = vmul.f32 %v979, %v1095
    %v1120 = vmul.f32 %v981, %v1096
    %v1121 = vmul.f32 %v983, %v1097
    %v1122 = vmul.f32 %v985, %v1098
    %v1123 = vmul.f32 %v987, %v1099
    %v1124 = vmul.f32 %v989, %v1100
    %v1125 = vmul.f32 %v991, %v1101
    %v1126 = vmul.f32 %v993, %v1102
    %v1127 = vmul.f32 %v995, %v1103
    %v1128 = vmul.f32 %v997, %v1104
    %v1129 = vmul.f32 %v999, %v1105
    %v1130 = vmul.f32 %v1001, %v1106
    %v1131 = vmul.f32 %v1003, %v1107
    %v1132 = vmul.f32 %v1005, %v1108
    %v1133 = vmul.f32 %v1007, %v1109
    %v1134 = vmul.f32 %v1009, %v1110
    %v1135 = vmul.f32 %v1011, %v1111
    %v1136 = vmul.f32 %v1013, %v1112
    %v1137 = vmul.f32 %v1015, %v1113
    %v1138 = vmul.f32 %v1017, %v1114
    %v1139 = vmul.f32 %v1019, %v1115
    %1140 = vrot.lane.b32.xlu0 %v271, 112
    %v1141 = vpop.permute.xlu0 %1140
    %1142 = vrot.lane.b32.xlu0 %v274, 112
    %v1143 = vpop.permute.xlu0 %1142
    %1144 = vrot.lane.b32.xlu0 %v277, 112
    %v1145 = vpop.permute.xlu0 %1144
    %v1149 = vsel %vm874, %v1116, 0
    %v1152 = vsel %vm874, %v1117, 0
    %v1155 = vsel %vm874, %v1118, 0
    %vm1157 = vcmask 1041408
    %v1158 = vsel %vm1157, %v1145, 0
    %1160 = vmatpush.msra.mxu0 0.0
    %1161 = vmatpush.msra.mxu0 0.0
    %1162 = vmatpush.msra.mxu0 0.0
    %1163 = vmatpush.msra.mxu0 0.0
    %1164 = vmatpush.msra.mxu0 0.0
    %1165 = vmatpush.msra.mxu0 0.0
    %1166 = vmatpush.msra.mxu0 0.0
    %1167 = vmatpush.msra.mxu0 0.0
    %1168 = vmatpush.msra.mxu0 0.0
    %1169 = vmatpush.msra.mxu0 0.0
    %1170 = vmatpush.msra.mxu0 0.0
    %1171 = vmatpush.msra.mxu0 0.0
    %1172 = vmatpush.msra.mxu0 0.0
    %1173 = vmatpush.msra.mxu0 %v1158
    %1174 = vmatpush.msra.mxu0 %v1143
    %1175 = vmatpush.msra.mxu0 %v1141
    %1176 = vmatmul.f32.gmra.mxu0 %v1149
    %v1177 = vpop.f32.mrf.mxu0
    %v1178 = vadd.f32 0.0, %v1177
    %1179 = vmatmul.f32.gmra.mxu0 %v1152
    %v1180 = vpop.f32.mrf.mxu0
    %v1181 = vadd.f32 0.0, %v1180
    %1182 = vmatmul.f32.gmra.mxu0 %v1155
    %v1183 = vpop.f32.mrf.mxu0
    %v1184 = vadd.f32 0.0, %v1183
    %1185 = vdwg.mxu0
    %1186 = vrot.lane.b32.xlu0 %v297, 112
    %v1187 = vpop.permute.xlu0 %1186
    %1188 = vrot.lane.b32.xlu0 %v300, 112
    %v1189 = vpop.permute.xlu0 %1188
    %1190 = vrot.lane.b32.xlu0 %v303, 112
    %v1191 = vpop.permute.xlu0 %1190
    %v1195 = vsel %vm874, %v1119, 0
    %v1198 = vsel %vm874, %v1120, 0
    %v1201 = vsel %vm874, %v1121, 0
    %v1203 = vsel %vm1157, %v1191, 0
    %1205 = vmatpush.msra.mxu0 0.0
    %1206 = vmatpush.msra.mxu0 0.0
    %1207 = vmatpush.msra.mxu0 0.0
    %1208 = vmatpush.msra.mxu0 0.0
    %1209 = vmatpush.msra.mxu0 0.0
    %1210 = vmatpush.msra.mxu0 0.0
    %1211 = vmatpush.msra.mxu0 0.0
    %1212 = vmatpush.msra.mxu0 0.0
    %1213 = vmatpush.msra.mxu0 0.0
    %1214 = vmatpush.msra.mxu0 0.0
    %1215 = vmatpush.msra.mxu0 0.0
    %1216 = vmatpush.msra.mxu0 0.0
    %1217 = vmatpush.msra.mxu0 0.0
    %1218 = vmatpush.msra.mxu0 %v1203
    %1219 = vmatpush.msra.mxu0 %v1189
    %1220 = vmatpush.msra.mxu0 %v1187
    %1221 = vmatmul.f32.gmra.mxu0 %v1195
    %v1222 = vpop.f32.mrf.mxu0
    %v1223 = vadd.f32 0.0, %v1222
    %1224 = vmatmul.f32.gmra.mxu0 %v1198
    %v1225 = vpop.f32.mrf.mxu0
    %v1226 = vadd.f32 0.0, %v1225
    %1227 = vmatmul.f32.gmra.mxu0 %v1201
    %v1228 = vpop.f32.mrf.mxu0
    %v1229 = vadd.f32 0.0, %v1228
    %1230 = vdwg.mxu0
    %1231 = vrot.lane.b32.xlu0 %v323, 112
    %v1232 = vpop.permute.xlu0 %1231
    %1233 = vrot.lane.b32.xlu0 %v326, 112
    %v1234 = vpop.permute.xlu0 %1233
    %1235 = vrot.lane.b32.xlu0 %v329, 112
    %v1236 = vpop.permute.xlu0 %1235
    %v1240 = vsel %vm874, %v1122, 0
    %v1243 = vsel %vm874, %v1123, 0
    %v1246 = vsel %vm874, %v1124, 0
    %v1248 = vsel %vm1157, %v1236, 0
    %1250 = vmatpush.msra.mxu0 0.0
    %1251 = vmatpush.msra.mxu0 0.0
    %1252 = vmatpush.msra.mxu0 0.0
    %1253 = vmatpush.msra.mxu0 0.0
    %1254 = vmatpush.msra.mxu0 0.0
    %1255 = vmatpush.msra.mxu0 0.0
    %1256 = vmatpush.msra.mxu0 0.0
    %1257 = vmatpush.msra.mxu0 0.0
    %1258 = vmatpush.msra.mxu0 0.0
    %1259 = vmatpush.msra.mxu0 0.0
    %1260 = vmatpush.msra.mxu0 0.0
    %1261 = vmatpush.msra.mxu0 0.0
    %1262 = vmatpush.msra.mxu0 0.0
    %1263 = vmatpush.msra.mxu0 %v1248
    %1264 = vmatpush.msra.mxu0 %v1234
    %1265 = vmatpush.msra.mxu0 %v1232
    %1266 = vmatmul.f32.gmra.mxu0 %v1240
    %v1267 = vpop.f32.mrf.mxu0
    %v1268 = vadd.f32 0.0, %v1267
    %1269 = vmatmul.f32.gmra.mxu0 %v1243
    %v1270 = vpop.f32.mrf.mxu0
    %v1271 = vadd.f32 0.0, %v1270
    %1272 = vmatmul.f32.gmra.mxu0 %v1246
    %v1273 = vpop.f32.mrf.mxu0
    %v1274 = vadd.f32 0.0, %v1273
    %1275 = vdwg.mxu0
    %1276 = vrot.lane.b32.xlu0 %v349, 112
    %v1277 = vpop.permute.xlu0 %1276
    %1278 = vrot.lane.b32.xlu0 %v352, 112
    %v1279 = vpop.permute.xlu0 %1278
    %1280 = vrot.lane.b32.xlu0 %v355, 112
    %v1281 = vpop.permute.xlu0 %1280
    %v1285 = vsel %vm874, %v1125, 0
    %v1288 = vsel %vm874, %v1126, 0
    %v1291 = vsel %vm874, %v1127, 0
    %v1293 = vsel %vm1157, %v1281, 0
    %1295 = vmatpush.msra.mxu0 0.0
    %1296 = vmatpush.msra.mxu0 0.0
    %1297 = vmatpush.msra.mxu0 0.0
    %1298 = vmatpush.msra.mxu0 0.0
    %1299 = vmatpush.msra.mxu0 0.0
    %1300 = vmatpush.msra.mxu0 0.0
    %1301 = vmatpush.msra.mxu0 0.0
    %1302 = vmatpush.msra.mxu0 0.0
    %1303 = vmatpush.msra.mxu0 0.0
    %1304 = vmatpush.msra.mxu0 0.0
    %1305 = vmatpush.msra.mxu0 0.0
    %1306 = vmatpush.msra.mxu0 0.0
    %1307 = vmatpush.msra.mxu0 0.0
    %1308 = vmatpush.msra.mxu0 %v1293
    %1309 = vmatpush.msra.mxu0 %v1279
    %1310 = vmatpush.msra.mxu0 %v1277
    %1311 = vmatmul.f32.gmra.mxu0 %v1285
    %v1312 = vpop.f32.mrf.mxu0
    %v1313 = vadd.f32 0.0, %v1312
    %1314 = vmatmul.f32.gmra.mxu0 %v1288
    %v1315 = vpop.f32.mrf.mxu0
    %v1316 = vadd.f32 0.0, %v1315
    %1317 = vmatmul.f32.gmra.mxu0 %v1291
    %v1318 = vpop.f32.mrf.mxu0
    %v1319 = vadd.f32 0.0, %v1318
    %1320 = vdwg.mxu0
    %1321 = vrot.lane.b32.xlu0 %v384, 112
    %v1322 = vpop.permute.xlu0 %1321
    %1323 = vrot.lane.b32.xlu0 %v387, 112
    %v1324 = vpop.permute.xlu0 %1323
    %1325 = vrot.lane.b32.xlu0 %v390, 112
    %v1326 = vpop.permute.xlu0 %1325
    %v1330 = vsel %vm874, %v1128, 0
    %v1333 = vsel %vm874, %v1129, 0
    %v1336 = vsel %vm874, %v1130, 0
    %v1338 = vsel %vm1157, %v1326, 0
    %1340 = vmatpush.msra.mxu0 0.0
    %1341 = vmatpush.msra.mxu0 0.0
    %1342 = vmatpush.msra.mxu0 0.0
    %1343 = vmatpush.msra.mxu0 0.0
    %1344 = vmatpush.msra.mxu0 0.0
    %1345 = vmatpush.msra.mxu0 0.0
    %1346 = vmatpush.msra.mxu0 0.0
    %1347 = vmatpush.msra.mxu0 0.0
    %1348 = vmatpush.msra.mxu0 0.0
    %1349 = vmatpush.msra.mxu0 0.0
    %1350 = vmatpush.msra.mxu0 0.0
    %1351 = vmatpush.msra.mxu0 0.0
    %1352 = vmatpush.msra.mxu0 0.0
    %1353 = vmatpush.msra.mxu0 %v1338
    %1354 = vmatpush.msra.mxu0 %v1324
    %1355 = vmatpush.msra.mxu0 %v1322
    %1356 = vmatmul.f32.gmra.mxu0 %v1330
    %v1357 = vpop.f32.mrf.mxu0
    %v1358 = vadd.f32 0.0, %v1357
    %1359 = vmatmul.f32.gmra.mxu0 %v1333
    %v1360 = vpop.f32.mrf.mxu0
    %v1361 = vadd.f32 0.0, %v1360
    %1362 = vmatmul.f32.gmra.mxu0 %v1336
    %v1363 = vpop.f32.mrf.mxu0
    %v1364 = vadd.f32 0.0, %v1363
    %1365 = vdwg.mxu0
    %1366 = vrot.lane.b32.xlu0 %v410, 112
    %v1367 = vpop.permute.xlu0 %1366
    %1368 = vrot.lane.b32.xlu0 %v413, 112
    %v1369 = vpop.permute.xlu0 %1368
    %1370 = vrot.lane.b32.xlu0 %v416, 112
    %v1371 = vpop.permute.xlu0 %1370
    %v1375 = vsel %vm874, %v1131, 0
    %v1378 = vsel %vm874, %v1132, 0
    %v1381 = vsel %vm874, %v1133, 0
    %v1383 = vsel %vm1157, %v1371, 0
    %1385 = vmatpush.msra.mxu0 0.0
    %1386 = vmatpush.msra.mxu0 0.0
    %1387 = vmatpush.msra.mxu0 0.0
    %1388 = vmatpush.msra.mxu0 0.0
    %1389 = vmatpush.msra.mxu0 0.0
    %1390 = vmatpush.msra.mxu0 0.0
    %1391 = vmatpush.msra.mxu0 0.0
    %1392 = vmatpush.msra.mxu0 0.0
    %1393 = vmatpush.msra.mxu0 0.0
    %1394 = vmatpush.msra.mxu0 0.0
    %1395 = vmatpush.msra.mxu0 0.0
    %1396 = vmatpush.msra.mxu0 0.0
    %1397 = vmatpush.msra.mxu0 0.0
    %1398 = vmatpush.msra.mxu0 %v1383
    %1399 = vmatpush.msra.mxu0 %v1369
    %1400 = vmatpush.msra.mxu0 %v1367
    %1401 = vmatmul.f32.gmra.mxu0 %v1375
    %v1402 = vpop.f32.mrf.mxu0
    %v1403 = vadd.f32 0.0, %v1402
    %1404 = vmatmul.f32.gmra.mxu0 %v1378
    %v1405 = vpop.f32.mrf.mxu0
    %v1406 = vadd.f32 0.0, %v1405
    %1407 = vmatmul.f32.gmra.mxu0 %v1381
    %v1408 = vpop.f32.mrf.mxu0
    %v1409 = vadd.f32 0.0, %v1408
    %1410 = vdwg.mxu0
    %1411 = vrot.lane.b32.xlu0 %v436, 112
    %v1412 = vpop.permute.xlu0 %1411
    %1413 = vrot.lane.b32.xlu0 %v439, 112
    %v1414 = vpop.permute.xlu0 %1413
    %1415 = vrot.lane.b32.xlu0 %v442, 112
    %v1416 = vpop.permute.xlu0 %1415
    %v1420 = vsel %vm874, %v1134, 0
    %v1423 = vsel %vm874, %v1135, 0
    %v1426 = vsel %vm874, %v1136, 0
    %v1428 = vsel %vm1157, %v1416, 0
    %1430 = vmatpush.msra.mxu0 0.0
    %1431 = vmatpush.msra.mxu0 0.0
    %1432 = vmatpush.msra.mxu0 0.0
    %1433 = vmatpush.msra.mxu0 0.0
    %1434 = vmatpush.msra.mxu0 0.0
    %1435 = vmatpush.msra.mxu0 0.0
    %1436 = vmatpush.msra.mxu0 0.0
    %1437 = vmatpush.msra.mxu0 0.0
    %1438 = vmatpush.msra.mxu0 0.0
    %1439 = vmatpush.msra.mxu0 0.0
    %1440 = vmatpush.msra.mxu0 0.0
    %1441 = vmatpush.msra.mxu0 0.0
    %1442 = vmatpush.msra.mxu0 0.0
    %1443 = vmatpush.msra.mxu0 %v1428
    %1444 = vmatpush.msra.mxu0 %v1414
    %1445 = vmatpush.msra.mxu0 %v1412
    %1446 = vmatmul.f32.gmra.mxu0 %v1420
    %v1447 = vpop.f32.mrf.mxu0
    %v1448 = vadd.f32 0.0, %v1447
    %1449 = vmatmul.f32.gmra.mxu0 %v1423
    %v1450 = vpop.f32.mrf.mxu0
    %v1451 = vadd.f32 0.0, %v1450
    %1452 = vmatmul.f32.gmra.mxu0 %v1426
    %v1453 = vpop.f32.mrf.mxu0
    %v1454 = vadd.f32 0.0, %v1453
    %1455 = vdwg.mxu0
    %1456 = vrot.lane.b32.xlu0 %v462, 112
    %v1457 = vpop.permute.xlu0 %1456
    %1458 = vrot.lane.b32.xlu0 %v465, 112
    %v1459 = vpop.permute.xlu0 %1458
    %1460 = vrot.lane.b32.xlu0 %v468, 112
    %v1461 = vpop.permute.xlu0 %1460
    %v1465 = vsel %vm874, %v1137, 0
    %v1468 = vsel %vm874, %v1138, 0
    %v1471 = vsel %vm874, %v1139, 0
    %v1473 = vsel %vm1157, %v1461, 0
    %1475 = vmatpush.msra.mxu0 0.0
    %1476 = vmatpush.msra.mxu0 0.0
    %1477 = vmatpush.msra.mxu0 0.0
    %1478 = vmatpush.msra.mxu0 0.0
    %1479 = vmatpush.msra.mxu0 0.0
    %1480 = vmatpush.msra.mxu0 0.0
    %1481 = vmatpush.msra.mxu0 0.0
    %1482 = vmatpush.msra.mxu0 0.0
    %1483 = vmatpush.msra.mxu0 0.0
    %1484 = vmatpush.msra.mxu0 0.0
    %1485 = vmatpush.msra.mxu0 0.0
    %1486 = vmatpush.msra.mxu0 0.0
    %1487 = vmatpush.msra.mxu0 0.0
    %1488 = vmatpush.msra.mxu0 %v1473
    %1489 = vmatpush.msra.mxu0 %v1459
    %1490 = vmatpush.msra.mxu0 %v1457
    %1491 = vmatmul.f32.gmra.mxu0 %v1465
    %v1492 = vpop.f32.mrf.mxu0
    %v1493 = vadd.f32 0.0, %v1492
    %1494 = vmatmul.f32.gmra.mxu0 %v1468
    %v1495 = vpop.f32.mrf.mxu0
    %v1496 = vadd.f32 0.0, %v1495
    %1497 = vmatmul.f32.gmra.mxu0 %v1471
    %v1498 = vpop.f32.mrf.mxu0
    %v1499 = vadd.f32 0.0, %v1498
    %1500 = vdwg.mxu0
    %v1501 = vsel %vm51, %v1178, 0.0
    %v1502 = vsel %vm51, %v1223, 0.0
    %v1503 = vadd.f32 %v1501, %v1502
    %v1504 = vsel %vm51, %v1268, 0.0
    %v1505 = vadd.f32 %v1503, %v1504
    %v1506 = vsel %vm51, %v1313, 0.0
    %v1507 = vadd.f32 %v1505, %v1506
    %v1508 = vsel %vm51, %v1181, 0.0
    %v1509 = vsel %vm51, %v1226, 0.0
    %v1510 = vadd.f32 %v1508, %v1509
    %v1511 = vsel %vm51, %v1271, 0.0
    %v1512 = vadd.f32 %v1510, %v1511
    %v1513 = vsel %vm51, %v1316, 0.0
    %v1514 = vadd.f32 %v1512, %v1513
    %v1515 = vsel %vm58, %v1184, 0.0
    %v1516 = vsel %vm58, %v1229, 0.0
    %v1517 = vadd.f32 %v1515, %v1516
    %v1518 = vsel %vm58, %v1274, 0.0
    %v1519 = vadd.f32 %v1517, %v1518
    %v1520 = vsel %vm58, %v1319, 0.0
    %v1521 = vadd.f32 %v1519, %v1520
    %v1522 = vsel %vm51, %v1358, 0.0
    %v1523 = vsel %vm51, %v1403, 0.0
    %v1524 = vadd.f32 %v1522, %v1523
    %v1525 = vsel %vm51, %v1448, 0.0
    %v1526 = vadd.f32 %v1524, %v1525
    %v1527 = vsel %vm51, %v1493, 0.0
    %v1528 = vadd.f32 %v1526, %v1527
    %v1529 = vsel %vm51, %v1361, 0.0
    %v1530 = vsel %vm51, %v1406, 0.0
    %v1531 = vadd.f32 %v1529, %v1530
    %v1532 = vsel %vm51, %v1451, 0.0
    %v1533 = vadd.f32 %v1531, %v1532
    %v1534 = vsel %vm51, %v1496, 0.0
    %v1535 = vadd.f32 %v1533, %v1534
    %v1536 = vsel %vm58, %v1364, 0.0
    %v1537 = vsel %vm58, %v1409, 0.0
    %v1538 = vadd.f32 %v1536, %v1537
    %v1539 = vsel %vm58, %v1454, 0.0
    %v1540 = vadd.f32 %v1538, %v1539
    %v1541 = vsel %vm58, %v1499, 0.0
    %v1542 = vadd.f32 %v1540, %v1541
    %v1543 = vadd.f32 %v45, %v1507
    %v1544 = vadd.f32 %v46, %v1514
    %v1545 = vadd.f32 %v47, %v1521
    %v1546 = vadd.f32 %v48, %v1528
    %v1547 = vadd.f32 %v49, %v1535
    %v1548 = vadd.f32 %v50, %v1542
    %v1549 = vld [vmem:[%s4] sm:$0x1]
    %v1551 = vperm.slane %v1549, 0
    %v1553 = vadd.f32 %v1543, %v1551
    %v1554 = vadd.f32 %v1544, %v1551
    %v1555 = vadd.f32 %v1545, %v1551
    %v1556 = vadd.f32 %v1546, %v1551
    %v1557 = vadd.f32 %v1547, %v1551
    %v1558 = vadd.f32 %v1548, %v1551
    %vm1559 = vcmask 139264
    %v1560 = vsel %vm1559, %v1116, 0.0
    %v1561 = vsel %vm1559, %v1119, 0.0
    %v1562 = vadd.f32 %v1560, %v1561
    %v1563 = vsel %vm1559, %v1122, 0.0
    %v1564 = vadd.f32 %v1562, %v1563
    %v1565 = vsel %vm1559, %v1125, 0.0
    %v1566 = vadd.f32 %v1564, %v1565
    %v1567 = vsel %vm1559, %v1128, 0.0
    %v1568 = vsel %vm1559, %v1131, 0.0
    %v1569 = vadd.f32 %v1567, %v1568
    %v1570 = vsel %vm1559, %v1134, 0.0
    %v1571 = vadd.f32 %v1569, %v1570
    %v1572 = vsel %vm1559, %v1137, 0.0
    %v1573 = vadd.f32 %v1571, %v1572
    %v1574 = vrcp.pop 4.0
    %v1575 = vmul.f32 4.0, %v1574
    %v1576 = vsub.f32 1.0, %v1575
    %v1577 = vmul.f32 %v1574, %v1576
    %v1578 = vadd.f32 %v1574, %v1577
    %vm1579 = vweird.f32 %v1574
    %v1580 = vsel %vm1579, %v1574, %v1578
    %v1581 = vmul.f32 %v1566, %v1580
    %v1582 = vmul.f32 %v1573, %v1580
    %vm1583 = vcmask 140289
    %v1584 = vsel %vm1583, %v1116, 0.0
    %v1585 = vsel %vm1583, %v1119, 0.0
    %v1586 = vadd.f32 %v1584, %v1585
    %v1587 = vsel %vm1583, %v1122, 0.0
    %v1588 = vadd.f32 %v1586, %v1587
    %v1589 = vsel %vm1583, %v1125, 0.0
    %v1590 = vadd.f32 %v1588, %v1589
    %v1591 = vsel %vm1583, %v1128, 0.0
    %v1592 = vsel %vm1583, %v1131, 0.0
    %v1593 = vadd.f32 %v1591, %v1592
    %v1594 = vsel %vm1583, %v1134, 0.0
    %v1595 = vadd.f32 %v1593, %v1594
    %v1596 = vsel %vm1583, %v1137, 0.0
    %v1597 = vadd.f32 %v1595, %v1596
    %v1598 = vmul.f32 %v1590, %v1580
    %v1599 = vmul.f32 %v1597, %v1580
    %1602 = vrot.lane.b32.xlu0 %v1581, 126
    %v1603 = vpop.permute.xlu0 %1602
    %1604 = vrot.lane.b32.xlu0 %v1582, 126
    %v1605 = vpop.permute.xlu0 %1604
    %vm1608 = vcmask 122880
    %1609 = vst.msk [vmem:[#allocation5] sm:$0x1] %vm1608, %v1603
    %1610 = vst.msk [vmem:[#allocation5 + $0x1] sm:$0x1] %vm1608, %v1605
    %1613 = vrot.lane.b32.xlu0 %v1598, 126
    %v1614 = vpop.permute.xlu0 %1613
    %1615 = vrot.lane.b32.xlu0 %v1599, 126
    %v1616 = vpop.permute.xlu0 %1615
    %vm1619 = vcmask 123905
    %1620 = vst.msk [vmem:[#allocation6 - $0x1] sm:$0x2] %vm1619, %v1614
    %1621 = vst.msk [vmem:[#allocation6] sm:$0x2] %vm1619, %v1616
    %v1622 = vlaneseq
    %v1623 = vshrl.u32 %v1622, 7
    %v1624 = vadd.s32 %v1623, 8
    %v1625 = vadd.s32 %v1623, 16
    %v1626 = vlaneseq
    %v1627 = vand.u32 %v1626, 127
    %vm1628 = vcmp.eq.s32.totalorder %v1623, %v1627
    %vm1629 = vcmp.eq.s32.totalorder %v1624, %v1627
    %vm1630 = vcmp.eq.s32.totalorder %v1625, %v1627
    %v1631 = vsel %vm1628, 1, 0
    %v1632 = vsel %vm1629, 1, 0
    %v1633 = vsel %vm1630, 1, 0
    %v1634 = vcvt.s32.f32 %v1631
    %v1635 = vcvt.s32.f32 %v1632
    %v1636 = vcvt.s32.f32 %v1633
    %v1637 = vrot.slane %v1598, 1
    %v1638 = vrot.slane %v1599, 1
    %v1641 = vadd.f32 %v1581, %v1637
    %v1642 = vadd.f32 %v1582, %v1638
    %v1643 = vrot.slane %v1581, 7
    %v1644 = vrot.slane %v1582, 7
    %vm1647 = vcmp.gt.f32.partialorder %v1598, %v1643
    %vm1648 = vcmp.gt.f32.partialorder %v1599, %v1644
    %v1649 = vsel %vm1647, 1, 0
    %v1650 = vsel %vm1648, 1, 0
    %v1651 = vcvt.s32.f32 %v1649
    %v1652 = vcvt.s32.f32 %v1650
    %v1653 = vperm.slane %v1641, 0
    %v1654 = vperm.slane %v1642, 0
    %v1655 = vmul.f32 %v1653, %v1634
    %v1656 = vmul.f32 %v1653, %v1635
    %v1657 = vmul.f32 %v1653, %v1636
    %v1658 = vmul.f32 %v1654, %v1634
    %v1659 = vmul.f32 %v1654, %v1635
    %v1660 = vmul.f32 %v1654, %v1636
    %v1661 = vsel %vm874, %v1655, 0.0
    %1662 = vadd.xlane.f32.xlu0 %v1661
    %v1663 = vpop.xlane.xlu0 %1662
    %v1664 = vsel %vm874, %v1656, 0.0
    %1665 = vadd.xlane.f32.xlu0 %v1664
    %v1666 = vpop.xlane.xlu0 %1665
    %v1667 = vsel %vm881, %v1657, 0.0
    %1668 = vadd.xlane.f32.xlu0 %v1667
    %v1669 = vpop.xlane.xlu0 %1668
    %v1670 = vsel %vm874, %v1658, 0.0
    %1671 = vadd.xlane.f32.xlu0 %v1670
    %v1672 = vpop.xlane.xlu0 %1671
    %v1673 = vsel %vm874, %v1659, 0.0
    %1674 = vadd.xlane.f32.xlu0 %v1673
    %v1675 = vpop.xlane.xlu0 %1674
    %v1676 = vsel %vm881, %v1660, 0.0
    %1677 = vadd.xlane.f32.xlu0 %v1676
    %v1678 = vpop.xlane.xlu0 %1677
    %vm1679 = vcmp.ge.s32.totalorder %v1627, 2
    %vm1680 = vcmp.gt.f32.partialorder %v1653, %v1663
    %vm1681 = vcmp.gt.f32.partialorder %v1653, %v1666
    %vm1682 = vcmp.gt.f32.partialorder %v1653, %v1669
    %vm1683 = vcmp.gt.f32.partialorder %v1654, %v1672
    %vm1684 = vcmp.gt.f32.partialorder %v1654, %v1675
    %vm1685 = vcmp.gt.f32.partialorder %v1654, %v1678
    %vm1686 = vcmp.eq.f32.partialorder %v1653, %v1663
    %vm1687 = vcmp.eq.f32.partialorder %v1653, %v1666
    %vm1688 = vcmp.eq.f32.partialorder %v1653, %v1669
    %vm1689 = vcmp.eq.f32.partialorder %v1654, %v1672
    %vm1690 = vcmp.eq.f32.partialorder %v1654, %v1675
    %vm1691 = vcmp.eq.f32.partialorder %v1654, %v1678
    %vm1692 = vcmp.lt.s32.totalorder %v1627, %v1623
    %vm1693 = vcmp.lt.s32.totalorder %v1627, %v1624
    %vm1694 = vcmp.lt.s32.totalorder %v1627, %v1625
    %v1695 = vsel %vm1692, 1, 0
    %v1696 = vsel %vm1693, 1, 0
    %v1697 = vsel %vm1694, 1, 0
    %vm1698 = vcmp.eq.s32.totalorder %v1695, 1
    %vm1699 = vcmp.eq.s32.totalorder %v1696, 1
    %vm1700 = vcmp.eq.s32.totalorder %v1697, 1
    %vm1701 = vmand %vm1686, %vm1698
    %vm1702 = vmand %vm1687, %vm1699
    %vm1703 = vmand %vm1688, %vm1700
    %vm1704 = vmand %vm1689, %vm1698
    %vm1705 = vmand %vm1690, %vm1699
    %vm1706 = vmand %vm1691, %vm1700
    %vm1707 = vmor %vm1680, %vm1701
    %vm1708 = vmor %vm1681, %vm1702
    %vm1709 = vmor %vm1682, %vm1703
    %vm1710 = vmor %vm1683, %vm1704
    %vm1711 = vmor %vm1684, %vm1705
    %vm1712 = vmor %vm1685, %vm1706
    %v1713 = vsel %vm1679, 1, 0
    %vm1714 = vcmp.eq.s32.totalorder %v1713, 1
    %vm1715 = vmand %vm1714, %vm1707
    %vm1716 = vmand %vm1714, %vm1708
    %vm1717 = vmand %vm1714, %vm1709
    %vm1718 = vmand %vm1714, %vm1710
    %vm1719 = vmand %vm1714, %vm1711
    %vm1720 = vmand %vm1714, %vm1712
    %v1721 = vsel %vm1715, 1, 0
    %v1722 = vsel %vm1716, 1, 0
    %v1723 = vsel %vm1717, 1, 0
    %v1724 = vsel %vm1718, 1, 0
    %v1725 = vsel %vm1719, 1, 0
    %v1726 = vsel %vm1720, 1, 0
    %v1727 = vcvt.s32.f32 %v1721
    %v1728 = vcvt.s32.f32 %v1722
    %v1729 = vcvt.s32.f32 %v1723
    %v1730 = vcvt.s32.f32 %v1724
    %v1731 = vcvt.s32.f32 %v1725
    %v1732 = vcvt.s32.f32 %v1726
    %v1733 = vsel %vm874, %v1727, 0.0
    %1734 = vadd.xlane.f32.xlu0 %v1733
    %v1735 = vpop.xlane.xlu0 %1734
    %v1736 = vsel %vm874, %v1728, 0.0
    %1737 = vadd.xlane.f32.xlu0 %v1736
    %v1738 = vpop.xlane.xlu0 %1737
    %v1739 = vsel %vm881, %v1729, 0.0
    %1740 = vadd.xlane.f32.xlu0 %v1739
    %v1741 = vpop.xlane.xlu0 %1740
    %v1742 = vsel %vm874, %v1730, 0.0
    %1743 = vadd.xlane.f32.xlu0 %v1742
    %v1744 = vpop.xlane.xlu0 %1743
    %v1745 = vsel %vm874, %v1731, 0.0
    %1746 = vadd.xlane.f32.xlu0 %v1745
    %v1747 = vpop.xlane.xlu0 %1746
    %v1748 = vsel %vm881, %v1732, 0.0
    %1749 = vadd.xlane.f32.xlu0 %v1748
    %v1750 = vpop.xlane.xlu0 %1749
    %v1751 = vperm.slane %v1651, 1
    %v1752 = vperm.slane %v1652, 1
    %v1753 = vmul.f32 %v1727, %v1751
    %v1754 = vmul.f32 %v1728, %v1751
    %v1755 = vmul.f32 %v1729, %v1751
    %v1756 = vmul.f32 %v1730, %v1752
    %v1757 = vmul.f32 %v1731, %v1752
    %v1758 = vmul.f32 %v1732, %v1752
    %v1759 = vsel %vm874, %v1753, 0.0
    %1760 = vadd.xlane.f32.xlu0 %v1759
    %v1761 = vpop.xlane.xlu0 %1760
    %v1762 = vsel %vm874, %v1754, 0.0
    %1763 = vadd.xlane.f32.xlu0 %v1762
    %v1764 = vpop.xlane.xlu0 %1763
    %v1765 = vsel %vm881, %v1755, 0.0
    %1766 = vadd.xlane.f32.xlu0 %v1765
    %v1767 = vpop.xlane.xlu0 %1766
    %v1768 = vsel %vm874, %v1756, 0.0
    %1769 = vadd.xlane.f32.xlu0 %v1768
    %v1770 = vpop.xlane.xlu0 %1769
    %v1771 = vsel %vm874, %v1757, 0.0
    %1772 = vadd.xlane.f32.xlu0 %v1771
    %v1773 = vpop.xlane.xlu0 %1772
    %v1774 = vsel %vm881, %v1758, 0.0
    %1775 = vadd.xlane.f32.xlu0 %v1774
    %v1776 = vpop.xlane.xlu0 %1775
    %v1777 = vsub.f32 %v1735, %v1761
    %v1778 = vsub.f32 %v1738, %v1764
    %v1779 = vsub.f32 %v1741, %v1767
    %v1780 = vsub.f32 %v1744, %v1770
    %v1781 = vsub.f32 %v1747, %v1773
    %v1782 = vsub.f32 %v1750, %v1776
    %v1783 = vmul.f32 %v1751, %v1634
    %v1784 = vmul.f32 %v1751, %v1635
    %v1785 = vmul.f32 %v1751, %v1636
    %v1786 = vmul.f32 %v1752, %v1634
    %v1787 = vmul.f32 %v1752, %v1635
    %v1788 = vmul.f32 %v1752, %v1636
    %v1789 = vsel %vm874, %v1783, 0.0
    %1790 = vadd.xlane.f32.xlu0 %v1789
    %v1791 = vpop.xlane.xlu0 %1790
    %v1792 = vsel %vm874, %v1784, 0.0
    %1793 = vadd.xlane.f32.xlu0 %v1792
    %v1794 = vpop.xlane.xlu0 %1793
    %v1795 = vsel %vm881, %v1785, 0.0
    %1796 = vadd.xlane.f32.xlu0 %v1795
    %v1797 = vpop.xlane.xlu0 %1796
    %v1798 = vsel %vm874, %v1786, 0.0
    %1799 = vadd.xlane.f32.xlu0 %v1798
    %v1800 = vpop.xlane.xlu0 %1799
    %v1801 = vsel %vm874, %v1787, 0.0
    %1802 = vadd.xlane.f32.xlu0 %v1801
    %v1803 = vpop.xlane.xlu0 %1802
    %v1804 = vsel %vm881, %v1788, 0.0
    %1805 = vadd.xlane.f32.xlu0 %v1804
    %v1806 = vpop.xlane.xlu0 %1805
    %vm1807 = vcmp.gt.f32.partialorder %v1791, 0.5
    %vm1808 = vcmp.gt.f32.partialorder %v1794, 0.5
    %vm1809 = vcmp.gt.f32.partialorder %v1797, 0.5
    %vm1810 = vcmp.gt.f32.partialorder %v1800, 0.5
    %vm1811 = vcmp.gt.f32.partialorder %v1803, 0.5
    %vm1812 = vcmp.gt.f32.partialorder %v1806, 0.5
    %v1813 = vsub.f32 15.0, %v1777
    %v1814 = vsub.f32 15.0, %v1778
    %v1815 = vsub.f32 15.0, %v1779
    %v1816 = vsub.f32 15.0, %v1780
    %v1817 = vsub.f32 15.0, %v1781
    %v1818 = vsub.f32 15.0, %v1782
    %v1819 = vsel %vm1807, %v1761, %v1813
    %v1820 = vsel %vm1808, %v1764, %v1814
    %v1821 = vsel %vm1809, %v1767, %v1815
    %v1822 = vsel %vm1810, %v1770, %v1816
    %v1823 = vsel %vm1811, %v1773, %v1817
    %v1824 = vsel %vm1812, %v1776, %v1818
    %v1825 = vmul.f32 %v1819, %v1634
    %v1826 = vmul.f32 %v1820, %v1635
    %v1827 = vmul.f32 %v1821, %v1636
    %v1828 = vmul.f32 %v1822, %v1634
    %v1829 = vmul.f32 %v1823, %v1635
    %v1830 = vmul.f32 %v1824, %v1636
    %v1831 = vsel %vm874, %v1825, 0.0
    %v1832 = vsel %vm874, %v1826, 0.0
    %v1833 = vadd.f32 %v1831, %v1832
    %v1834 = vsel %vm881, %v1827, 0.0
    %v1835 = vadd.f32 %v1833, %v1834
    %v1836 = vrot.slane %v1835, 4
    %v1837 = vadd.f32 %v1835, %v1836
    %v1838 = vrot.slane %v1837, 2
    %v1839 = vadd.f32 %v1837, %v1838
    %v1840 = vrot.slane %v1839, 1
    %v1841 = vadd.f32 %v1839, %v1840
    %v1842 = vsel %vm874, %v1828, 0.0
    %v1843 = vsel %vm874, %v1829, 0.0
    %v1844 = vadd.f32 %v1842, %v1843
    %v1845 = vsel %vm881, %v1830, 0.0
    %v1846 = vadd.f32 %v1844, %v1845
    %v1847 = vrot.slane %v1846, 4
    %v1848 = vadd.f32 %v1846, %v1847
    %v1849 = vrot.slane %v1848, 2
    %v1850 = vadd.f32 %v1848, %v1849
    %v1851 = vrot.slane %v1850, 1
    %v1852 = vadd.f32 %v1850, %v1851
    %vm1853 = vcmp.eq.s32.totalorder %v1627, 0
    %vm1854 = vcmp.le.f32.partialorder %v1841, 7.0
    %vm1855 = vcmp.le.f32.partialorder %v1852, 7.0
    %vm1856 = vmand %vm1714, %vm1854
    %vm1857 = vmand %vm1714, %vm1855
    %v1858 = vadd.f32 %v1841, 1.0
    %v1859 = vadd.f32 %v1852, 1.0
    %v1860 = vsel %vm1856, %v1858, -1.0
    %v1861 = vsel %vm1857, %v1859, -1.0
    %v1862 = vsel %vm1853, 1, 0
    %vm1863 = vcmp.eq.s32.totalorder %v1862, 1
    %v1864 = vsel %vm1863, 0.0, %v1860
    %v1865 = vsel %vm1863, 0.0, %v1861
    %vm1866 = vcmp.eq.s32.totalorder %v1627, 1
    %vm1867 = vcmp.ge.f32.partialorder %v1841, 8.0
    %vm1868 = vcmp.ge.f32.partialorder %v1852, 8.0
    %vm1869 = vmand %vm1714, %vm1867
    %vm1870 = vmand %vm1714, %vm1868
    %v1871 = vsub.f32 %v1841, 7.0
    %v1872 = vsub.f32 %v1852, 7.0
    %v1873 = vsel %vm1869, %v1871, -1.0
    %v1874 = vsel %vm1870, %v1872, -1.0
    %v1875 = vsel %vm1866, 1, 0
    %vm1876 = vcmp.eq.s32.totalorder %v1875, 1
    %v1877 = vsel %vm1876, 0.0, %v1873
    %v1878 = vsel %vm1876, 0.0, %v1874
    %v1879 = vcvt.s32.f32 %v1623
    %v1880 = vcvt.s32.f32 %v1624
    %vm1881 = vcmp.eq.f32.partialorder %v1879, %v1864
    %vm1882 = vcmp.eq.f32.partialorder %v1880, %v1864
    %vm1883 = vcmp.eq.f32.partialorder %v1879, %v1865
    %vm1884 = vcmp.eq.f32.partialorder %v1880, %v1865
    %v1885 = vsel %vm1881, 1, 0
    %v1886 = vsel %vm1882, 1, 0
    %v1887 = vsel %vm1883, 1, 0
    %v1888 = vsel %vm1884, 1, 0
    %v1889 = vcvt.s32.f32 %v1885
    %v1890 = vcvt.s32.f32 %v1886
    %v1891 = vcvt.s32.f32 %v1887
    %v1892 = vcvt.s32.f32 %v1888
    %vm1893 = vcmp.eq.f32.partialorder %v1879, %v1877
    %vm1894 = vcmp.eq.f32.partialorder %v1880, %v1877
    %vm1895 = vcmp.eq.f32.partialorder %v1879, %v1878
    %vm1896 = vcmp.eq.f32.partialorder %v1880, %v1878
    %v1897 = vsel %vm1893, 1, 0
    %v1898 = vsel %vm1894, 1, 0
    %v1899 = vsel %vm1895, 1, 0
    %v1900 = vsel %vm1896, 1, 0
    %v1901 = vcvt.s32.f32 %v1897
    %v1902 = vcvt.s32.f32 %v1898
    %v1903 = vcvt.s32.f32 %v1899
    %v1904 = vcvt.s32.f32 %v1900
    %v1906 = vsel %vm874, %v1889, 0
    %v1909 = vsel %vm874, %v1890, 0
    %v1912 = vsel %vm1157, %v1555, 0
    %1914 = vmatpush.msra.mxu0 0.0
    %1915 = vmatpush.msra.mxu0 0.0
    %1916 = vmatpush.msra.mxu0 0.0
    %1917 = vmatpush.msra.mxu0 0.0
    %1918 = vmatpush.msra.mxu0 0.0
    %1919 = vmatpush.msra.mxu0 0.0
    %1920 = vmatpush.msra.mxu0 0.0
    %1921 = vmatpush.msra.mxu0 0.0
    %1922 = vmatpush.msra.mxu0 0.0
    %1923 = vmatpush.msra.mxu0 0.0
    %1924 = vmatpush.msra.mxu0 0.0
    %1925 = vmatpush.msra.mxu0 0.0
    %1926 = vmatpush.msra.mxu0 0.0
    %1927 = vmatpush.msra.mxu0 %v1912
    %1928 = vmatpush.msra.mxu0 %v1554
    %1929 = vmatpush.msra.mxu0 %v1553
    %1930 = vmatmul.f32.gmra.mxu0 %v1906
    %v1931 = vpop.f32.mrf.mxu0
    %v1932 = vadd.f32 0.0, %v1931
    %1933 = vmatmul.f32.gmra.mxu0 %v1909
    %v1934 = vpop.f32.mrf.mxu0
    %v1935 = vadd.f32 0.0, %v1934
    %1936 = vdwg.mxu0
    %v1938 = vsel %vm874, %v1891, 0
    %v1941 = vsel %vm874, %v1892, 0
    %v1944 = vsel %vm1157, %v1558, 0
    %1946 = vmatpush.msra.mxu0 0.0
    %1947 = vmatpush.msra.mxu0 0.0
    %1948 = vmatpush.msra.mxu0 0.0
    %1949 = vmatpush.msra.mxu0 0.0
    %1950 = vmatpush.msra.mxu0 0.0
    %1951 = vmatpush.msra.mxu0 0.0
    %1952 = vmatpush.msra.mxu0 0.0
    %1953 = vmatpush.msra.mxu0 0.0
    %1954 = vmatpush.msra.mxu0 0.0
    %1955 = vmatpush.msra.mxu0 0.0
    %1956 = vmatpush.msra.mxu0 0.0
    %1957 = vmatpush.msra.mxu0 0.0
    %1958 = vmatpush.msra.mxu0 0.0
    %1959 = vmatpush.msra.mxu0 %v1944
    %1960 = vmatpush.msra.mxu0 %v1557
    %1961 = vmatpush.msra.mxu0 %v1556
    %1962 = vmatmul.f32.gmra.mxu0 %v1938
    %v1963 = vpop.f32.mrf.mxu0
    %v1964 = vadd.f32 0.0, %v1963
    %1965 = vmatmul.f32.gmra.mxu0 %v1941
    %v1966 = vpop.f32.mrf.mxu0
    %v1967 = vadd.f32 0.0, %v1966
    %1968 = vdwg.mxu0
    %1969 = vst.msk [vmem:[%s6] sm:$0xff] %vm51, %v1932
    %vm1970 = vcmask 253952
    %1971 = vst.msk [vmem:[%s6 + $0x8] sm:$0x1] %vm1970, %v1935
    %1972 = vst.msk [vmem:[%s6 + $0x10] sm:$0xff] %vm51, %v1964
    %1973 = vst.msk [vmem:[%s6 + $0x18] sm:$0x1] %vm1970, %v1967
    %v1975 = vsel %vm874, %v1901, 0
    %v1978 = vsel %vm874, %v1902, 0
    %1980 = vmatpush.msra.mxu0 0.0
    %1981 = vmatpush.msra.mxu0 0.0
    %1982 = vmatpush.msra.mxu0 0.0
    %1983 = vmatpush.msra.mxu0 0.0
    %1984 = vmatpush.msra.mxu0 0.0
    %1985 = vmatpush.msra.mxu0 0.0
    %1986 = vmatpush.msra.mxu0 0.0
    %1987 = vmatpush.msra.mxu0 0.0
    %1988 = vmatpush.msra.mxu0 0.0
    %1989 = vmatpush.msra.mxu0 0.0
    %1990 = vmatpush.msra.mxu0 0.0
    %1991 = vmatpush.msra.mxu0 0.0
    %1992 = vmatpush.msra.mxu0 0.0
    %1993 = vmatpush.msra.mxu0 %v1912
    %1994 = vmatpush.msra.mxu0 %v1554
    %1995 = vmatpush.msra.mxu0 %v1553
    %1996 = vmatmul.f32.gmra.mxu0 %v1975
    %v1997 = vpop.f32.mrf.mxu0
    %v1998 = vadd.f32 0.0, %v1997
    %1999 = vmatmul.f32.gmra.mxu0 %v1978
    %v2000 = vpop.f32.mrf.mxu0
    %v2001 = vadd.f32 0.0, %v2000
    %2002 = vdwg.mxu0
    %v2004 = vsel %vm874, %v1903, 0
    %v2007 = vsel %vm874, %v1904, 0
    %2009 = vmatpush.msra.mxu0 0.0
    %2010 = vmatpush.msra.mxu0 0.0
    %2011 = vmatpush.msra.mxu0 0.0
    %2012 = vmatpush.msra.mxu0 0.0
    %2013 = vmatpush.msra.mxu0 0.0
    %2014 = vmatpush.msra.mxu0 0.0
    %2015 = vmatpush.msra.mxu0 0.0
    %2016 = vmatpush.msra.mxu0 0.0
    %2017 = vmatpush.msra.mxu0 0.0
    %2018 = vmatpush.msra.mxu0 0.0
    %2019 = vmatpush.msra.mxu0 0.0
    %2020 = vmatpush.msra.mxu0 0.0
    %2021 = vmatpush.msra.mxu0 0.0
    %2022 = vmatpush.msra.mxu0 %v1944
    %2023 = vmatpush.msra.mxu0 %v1557
    %2024 = vmatpush.msra.mxu0 %v1556
    %2025 = vmatmul.f32.gmra.mxu0 %v2004
    %v2026 = vpop.f32.mrf.mxu0
    %v2027 = vadd.f32 0.0, %v2026
    %2028 = vmatmul.f32.gmra.mxu0 %v2007
    %v2029 = vpop.f32.mrf.mxu0
    %v2030 = vadd.f32 0.0, %v2029
    %2031 = vdwg.mxu0
    %2032 = vst.msk [vmem:[%s7] sm:$0xff] %vm51, %v1998
    %2033 = vst.msk [vmem:[%s7 + $0x8] sm:$0x1] %vm1970, %v2001
    %2034 = vst.msk [vmem:[%s7 + $0x10] sm:$0xff] %vm51, %v2027
    %2035 = vst.msk [vmem:[%s7 + $0x18] sm:$0x1] %vm1970, %v2030
    // Predicated region
    $region30: #{_run_block.1} parent=1 // pred_check
      _
    $region31: #{_run_block.1} parent=1 // pred_check_branch
      %2037 = sbr.rel (0) target = $region33
    $region32: #{_run_block.1} parent=1 // pred_region
      _
    $region33: #{_run_block.1} parent=1 // pred_fallthru
      _
    // Predicated region
    $region34: #{_run_block.1} parent=1 // pred_check
      _
    $region35: #{_run_block.1} parent=1 // pred_check_branch
      %2039 = sbr.rel (0) target = $region37
    $region36: #{_run_block.1} parent=1 // pred_region
      _
    $region37: #{_run_block.1} parent=1 // pred_fallthru
      _
    // Predicated region
    $region38: #{_run_block.1} parent=1 // pred_check
      _
    $region39: #{_run_block.1} parent=1 // pred_check_branch
      %2041 = sbr.rel (0) target = $region41
    $region40: #{_run_block.1} parent=1 // pred_region
      %2043 = vsyncadd [#allocation4], 0
      %s2044 = sshll.u32 [#allocation5], 4
      %s2045 = int_to_ptr.vmem [resolvable:$true] %s2044
      %s2046 = sshll.u32 %s8, 4
      %s2047 = int_to_ptr.hbm [resolvable:$true] %s2046
      %2052 = dma.vmem_to_hbm [thread:$0]  %s2045, 32, %s2047, [#allocation4], 16, 16, 1
    $region41: #{_run_block.1} parent=1 // pred_fallthru
      _
    // Predicated region
    $region42: #{_run_block.1} parent=1 // pred_check
      _
    $region43: #{_run_block.1} parent=1 // pred_check_branch
      %2054 = sbr.rel (0) target = $region45
    $region44: #{_run_block.1} parent=1 // pred_region
      %2056 = vsyncadd [#allocation7], 0
      %s2057 = sshll.u32 [#allocation6], 4
      %s2058 = int_to_ptr.vmem [resolvable:$true] %s2057
      %s2059 = sshll.u32 %s9, 4
      %s2060 = int_to_ptr.hbm [resolvable:$true] %s2059
      %2065 = dma.vmem_to_hbm [thread:$0]  %s2058, 32, %s2060, [#allocation7], 16, 16, 1
    $region45: #{_run_block.1} parent=1 // pred_fallthru
      _
    // Predicated region
    $region46: #{_run_block.1} parent=1 // pred_check
      _
    $region47: #{_run_block.1} parent=1 // pred_check_branch
      %2067 = sbr.rel (0) target = $region49
    $region48: #{_run_block.1} parent=1 // pred_region
      _
    $region49: #{_run_block.1} parent=1 // pred_fallthru
      _
    // Predicated region
    $region50: #{_run_block.1} parent=1 // pred_check
      _
    $region51: #{_run_block.1} parent=1 // pred_check_branch
      %2069 = sbr.rel (0) target = $region53
    $region52: #{_run_block.1} parent=1 // pred_region
      _
    $region53: #{_run_block.1} parent=1 // pred_fallthru
      _
    // Predicated region
    $region54: #{_run_block.1} parent=1 // pred_check
      _
    $region55: #{_run_block.1} parent=1 // pred_check_branch
      %2071 = sbr.rel (0) target = $region57
    $region56: #{_run_block.1} parent=1 // pred_region
      %2073 = dma.done [#allocation4], 32
    $region57: #{_run_block.1} parent=1 // pred_fallthru
      _
    // Predicated region
    $region58: #{_run_block.1} parent=1 // pred_check
      _
    $region59: #{_run_block.1} parent=1 // pred_check_branch
      %2075 = sbr.rel (0) target = $region61
    $region60: #{_run_block.1} parent=1 // pred_region
      %2077 = dma.done [#allocation7], 32
    $region61: #{_run_block.1} parent=1 // pred_fallthru
      _
    %2078 = vsyncpa [#allocation3], 1
    %2079 = vsyncpa [#allocation4], 1
    %2080 = vsyncpa [#allocation7], 1

</llo_original>
